<compile_context>
chip_gen: v7x
topology: tpu7x:2x2x1
jax: 0.10.0
libtpu: 0.0.40
codegen_flags: <defaults>
</compile_context>

<pallas_src>
import math

import jax
import jax.numpy as jnp
from jax.experimental import pallas as pl
from jax.experimental.pallas import tpu as pltpu

# Set to jnp.bfloat16 on v6e/v7x for 2-4x MXU throughput on the conv matmuls
# (accumulation stays f32 via preferred_element_type).  Kept f32 by default so
# the result matches the f32 PyTorch reference closely.
MXU_IN_DTYPE = jnp.float32


def _rows_per_strip(H, W):
    """Largest divisor of H such that rows*W <= 128 (MXU-row-sized strips)."""
    best = 1
    for r in range(1, H + 1):
        if H % r == 0 and r * W <= 128:
            best = r
    return best


def _make_attention_block_kernel(H, W, Cin, Cout, rows):
    n_strips = H // rows
    srows = rows * W              # matmul M per strip
    k3 = 3 * Cin                  # matmul K (W-im2col'ed)
    inv_hw = 1.0 / float(H * W)
    unroll = n_strips <= 8        # short fixed trip count -> unroll for LLO

    def kernel(xs_ref, w_ref, b_ref, fc1w_ref, fc1b_ref, fc2w_ref, fc2b_ref,
               ssew_ref, sseb_ref, o_ref, y_ref):
        # xs_ref : (H+2, W, 3*Cin)  padded + W-im2col'ed input (batch squeezed)
        # w_ref  : (3, 3*Cin, Cout) conv weight, one (3*Cin, Cout) matrix per di
        # y_ref  : (H*W, Cout) VMEM scratch holding relu(conv(x))
        # o_ref  : (H, W, Cout)

        bias = b_ref[...]                                        # (1, Cout)
        wtaps = [w_ref[di].astype(MXU_IN_DTYPE) for di in range(3)]

        # ---- pass 1: 3x3 conv + bias + ReLU, strip-mined over H -------------
        def conv_strip(r, csum):
            row0 = r * rows
            acc = jnp.zeros((srows, Cout), jnp.float32)
            for di in range(3):                                  # 3 static taps
                patch = xs_ref[pl.ds(row0 + di, rows), :, :]     # (rows, W, 3Cin)
                # layout-friendly reshape (W is a multiple of 8)
                patch = patch.reshape(srows, k3).astype(MXU_IN_DTYPE)
                acc = acc + jnp.dot(patch, wtaps[di],
                                    preferred_element_type=jnp.float32)
            y = jnp.maximum(acc + bias, 0.0)
            y_ref[pl.ds(pl.multiple_of(r * srows, srows), srows), :] = y
            return csum + jnp.sum(y, axis=0, keepdims=True)      # channel sums

        csum = jax.lax.fori_loop(0, n_strips, conv_strip,
                                 jnp.zeros((1, Cout), jnp.float32),
                                 unroll=unroll)

        # ---- channel-SE gate: mean -> FC -> relu -> FC -> sigmoid -----------
        sq = csum * inv_hw                                       # (1, Cout)
        h1 = jnp.maximum(
            jnp.dot(sq, fc1w_ref[...], preferred_element_type=jnp.float32)
            + fc1b_ref[...], 0.0)                                # (1, Cr)
        ch_gate = jax.nn.sigmoid(
            jnp.dot(h1, fc2w_ref[...], preferred_element_type=jnp.float32)
            + fc2b_ref[...])                                     # (1, Cout)

        # Hoist gate broadcasts out of the per-strip loop (no CSE inside loops).
        ch_gate_b = jnp.broadcast_to(ch_gate, (srows, Cout))
        ssew_b = jnp.broadcast_to(ssew_ref[...], (srows, Cout))
        sseb_b = jnp.broadcast_to(sseb_ref[...], (srows, 1))

        # ---- pass 2: apply cSE / sSE gates and write the output -------------
        def scse_strip(r, carry):
            y = y_ref[pl.ds(pl.multiple_of(r * srows, srows), srows), :]
            # spatial gate: Cout->1 projection as VPU mul + XLU lane reduce
            sp = jnp.sum(y * ssew_b, axis=-1, keepdims=True) + sseb_b
            out = jnp.maximum(y * ch_gate_b, y * jax.nn.sigmoid(sp))
            o_ref[pl.ds(pl.multiple_of(r * rows, rows), rows), :, :] = \
                out.reshape(rows, W, Cout)
            return carry

        jax.lax.fori_loop(0, n_strips, scse_strip, 0, unroll=unroll)

    return kernel


def attention_block_nhwc(x, p):
    """x: (B, H, W, Cin) float32 NHWC -> (B, H, W, Cout) float32."""
    B, H, W, Cin = x.shape
    Cout = p["w"].shape[-1]
    Cr = p["fc1w"].shape[-1]

    # "same" padding + im2col of the 3 W-taps (pure XLA glue, one fused op):
    # xs[b, h', w, dj*Cin + c] = xpad[b, h', w + dj, c]
    xp = jnp.pad(x, ((0, 0), (1, 1), (1, 1), (0, 0)))
    xs = jnp.concatenate([xp[:, :, j:j + W, :] for j in range(3)], axis=-1)
    wk = p["w"].reshape(3, 3 * Cin, Cout)      # (di, dj*Cin + c, Cout)

    rows = _rows_per_strip(H, W)
    kernel = _make_attention_block_kernel(H, W, Cin, Cout, rows)

    return pl.pallas_call(
        kernel,
        out_shape=jax.ShapeDtypeStruct((B, H, W, Cout), jnp.float32),
        grid=(B,),
        in_specs=[
            pl.BlockSpec((None, H + 2, W, 3 * Cin), lambda b: (b, 0, 0, 0)),
            pl.BlockSpec((3, 3 * Cin, Cout), lambda b: (0, 0, 0)),
            pl.BlockSpec((1, Cout), lambda b: (0, 0)),
            pl.BlockSpec((Cout, Cr), lambda b: (0, 0)),
            pl.BlockSpec((1, Cr), lambda b: (0, 0)),
            pl.BlockSpec((Cr, Cout), lambda b: (0, 0)),
            pl.BlockSpec((1, Cout), lambda b: (0, 0)),
            pl.BlockSpec((1, Cout), lambda b: (0, 0)),
            pl.BlockSpec((1, 1), lambda b: (0, 0)),
        ],
        out_specs=pl.BlockSpec((None, H, W, Cout), lambda b: (b, 0, 0, 0)),
        scratch_shapes=[pltpu.VMEM((H * W, Cout), jnp.float32)],
        compiler_params=pltpu.CompilerParams(
            dimension_semantics=("parallel",),        # dual-TC sharding on v7x
            vmem_limit_bytes=32 * 1024 * 1024,
        ),
    )(xs, wk, p["b"].reshape(1, Cout),
      p["fc1w"], p["fc1b"].reshape(1, Cr),
      p["fc2w"], p["fc2b"].reshape(1, Cout),
      p["ssew"].reshape(1, Cout), p["sseb"].reshape(1, 1))


def attention_block_forward(params, x_nchw):
    """PyTorch-layout entry point: NCHW in, NCHW out."""
    x = jnp.transpose(x_nchw, (0, 2, 3, 1)).astype(jnp.float32)
    y = attention_block_nhwc(x, params)
    return jnp.transpose(y, (0, 3, 1, 2))


# ------------------------- pure-JAX reference (no Pallas) -------------------

def reference_forward(p, x_nchw):
    x = jnp.transpose(x_nchw, (0, 2, 3, 1)).astype(jnp.float32)
    y = jax.lax.conv_general_dilated(
        x, p["w"], (1, 1), "SAME",
        dimension_numbers=("NHWC", "HWIO", "NHWC"),
        precision=jax.lax.Precision.HIGHEST)
    y = jax.nn.relu(y + p["b"])
    sq = jnp.mean(y, axis=(1, 2))                                   # (B, C)
    h1 = jax.nn.relu(sq @ p["fc1w"] + p["fc1b"])
    ch = jax.nn.sigmoid(h1 @ p["fc2w"] + p["fc2b"])                 # (B, C)
    cse = y * ch[:, None, None, :]
    sp = jax.nn.sigmoid(jnp.einsum("bhwc,c->bhw", y, p["ssew"]) + p["sseb"])
    sse = y * sp[..., None]
    out = jnp.maximum(cse, sse)
    return jnp.transpose(out, (0, 3, 1, 2))


# ------------------------------- params -------------------------------------

def init_params(key, dim, dim_out):
    ks = jax.random.split(key, 8)
    cr = dim_out // 2          # reduction_ratio = 2

    def nrm(k, shape, scale):
        return scale * jax.random.normal(k, shape, jnp.float32)

    return dict(
        # conv weight stored HWIO = (3, 3, Cin, Cout)
        w=nrm(ks[0], (3, 3, dim, dim_out), 1.0 / math.sqrt(9.0 * dim)),
        b=nrm(ks[1], (dim_out,), 0.01),
        fc1w=nrm(ks[2], (dim_out, cr), 1.0 / math.sqrt(float(dim_out))),
        fc1b=nrm(ks[3], (cr,), 0.01),
        fc2w=nrm(ks[4], (cr, dim_out), 1.0 / math.sqrt(float(cr))),
        fc2b=nrm(ks[5], (dim_out,), 0.01),
        ssew=nrm(ks[6], (dim_out,), 1.0 / math.sqrt(float(dim_out))),
        sseb=nrm(ks[7], (), 0.01),
    )


if __name__ == "__main__":
    key = jax.random.PRNGKey(0)
    B, DIM, DIM_OUT, H, W = 2, 32, 64, 16, 16

    params = init_params(key, DIM, DIM_OUT)
    x = jax.random.normal(jax.random.fold_in(key, 123), (B, DIM, H, W),
                          jnp.float32)

    fwd = jax.jit(attention_block_forward)
    out = jax.block_until_ready(fwd(params, x))

    assert out.shape == (B, DIM_OUT, H, W), out.shape
    assert out.dtype == jnp.float32
    assert bool(jnp.all(jnp.isfinite(out)))

    ref = jax.block_until_ready(reference_forward(params, x))
    max_err = float(jnp.max(jnp.abs(out - ref)))
    assert max_err < 5e-2, f"max abs error vs reference: {max_err}"

    print("KERNEL_OK")
</pallas_src>

<mosaic_0001>
module attributes {stable_mosaic.version = 11 : i64} {
  func.func @kernel(%arg0: i32, %arg1: memref<1x18x16x96xf32, #tpu.memory_space<vmem>>, %arg2: memref<3x96x64xf32, #tpu.memory_space<vmem>>, %arg3: memref<1x64xf32, #tpu.memory_space<vmem>>, %arg4: memref<64x32xf32, #tpu.memory_space<vmem>>, %arg5: memref<1x32xf32, #tpu.memory_space<vmem>>, %arg6: memref<32x64xf32, #tpu.memory_space<vmem>>, %arg7: memref<1x64xf32, #tpu.memory_space<vmem>>, %arg8: memref<1x64xf32, #tpu.memory_space<vmem>>, %arg9: memref<1x1xf32, #tpu.memory_space<vmem>>, %arg10: memref<1x16x16x64xf32, #tpu.memory_space<vmem>>, %arg11: memref<256x64xf32, #tpu.memory_space<vmem>>) attributes {dimension_semantics = [#tpu.dimension_semantics<parallel>], iteration_bounds = array<i64: 2>, scalar_prefetch = 0 : i64, scratch_operands = 1 : i64, tpu.core_type = #tpu.core_type<tc>, window_params = [{transform_indices = @transform_0, window_bounds = array<i64: 1, 18, 16, 96>}, {pipeline_mode = #tpu.pipeline_mode<synchronous>, transform_indices = @transform_1, window_bounds = array<i64: 3, 96, 64>}, {pipeline_mode = #tpu.pipeline_mode<synchronous>, transform_indices = @transform_2, window_bounds = array<i64: 1, 64>}, {pipeline_mode = #tpu.pipeline_mode<synchronous>, transform_indices = @transform_3, window_bounds = array<i64: 64, 32>}, {pipeline_mode = #tpu.pipeline_mode<synchronous>, transform_indices = @transform_4, window_bounds = array<i64: 1, 32>}, {pipeline_mode = #tpu.pipeline_mode<synchronous>, transform_indices = @transform_5, window_bounds = array<i64: 32, 64>}, {pipeline_mode = #tpu.pipeline_mode<synchronous>, transform_indices = @transform_6, window_bounds = array<i64: 1, 64>}, {pipeline_mode = #tpu.pipeline_mode<synchronous>, transform_indices = @transform_7, window_bounds = array<i64: 1, 64>}, {pipeline_mode = #tpu.pipeline_mode<synchronous>, transform_indices = @transform_8, window_bounds = array<i64: 1, 1>}, {transform_indices = @transform_9, window_bounds = array<i64: 1, 16, 16, 64>}]} {
    %c0 = arith.constant 0 : index
    %c0_0 = arith.constant 0 : index
    %0 = vector.load %arg3[%c0, %c0_0] : memref<1x64xf32, #tpu.memory_space<vmem>>, vector<1x64xf32>
    %c0_1 = arith.constant 0 : index
    %c0_2 = arith.constant 0 : index
    %c0_3 = arith.constant 0 : index
    %1 = vector.load %arg2[%c0_1, %c0_2, %c0_3] : memref<3x96x64xf32, #tpu.memory_space<vmem>>, vector<1x96x64xf32>
    %2 = vector.shape_cast %1 : vector<1x96x64xf32> to vector<96x64xf32>
    %c1 = arith.constant 1 : index
    %c0_4 = arith.constant 0 : index
    %c0_5 = arith.constant 0 : index
    %3 = vector.load %arg2[%c1, %c0_4, %c0_5] : memref<3x96x64xf32, #tpu.memory_space<vmem>>, vector<1x96x64xf32>
    %4 = vector.shape_cast %3 : vector<1x96x64xf32> to vector<96x64xf32>
    %c2 = arith.constant 2 : index
    %c0_6 = arith.constant 0 : index
    %c0_7 = arith.constant 0 : index
    %5 = vector.load %arg2[%c2, %c0_6, %c0_7] : memref<3x96x64xf32, #tpu.memory_space<vmem>>, vector<1x96x64xf32>
    %6 = vector.shape_cast %5 : vector<1x96x64xf32> to vector<96x64xf32>
    %cst = arith.constant 0.000000e+00 : f32
    %7 = vector.broadcast %cst : f32 to vector<1x64xf32>
    %c0_i32 = arith.constant 0 : i32
    %c8_i32 = arith.constant 8 : i32
    %8 = arith.muli %c0_i32, %c8_i32 : i32
    %cst_8 = arith.constant 0.000000e+00 : f32
    %9 = vector.broadcast %cst_8 : f32 to vector<128x64xf32>
    %c0_i32_9 = arith.constant 0 : i32
    %10 = arith.addi %8, %c0_i32_9 : i32
    %c0_10 = arith.constant 0 : index
    %11 = arith.index_cast %10 : i32 to index
    %c0_11 = arith.constant 0 : index
    %c0_12 = arith.constant 0 : index
    %12 = vector.load %arg1[%c0_10, %11, %c0_11, %c0_12] : memref<1x18x16x96xf32, #tpu.memory_space<vmem>>, vector<1x8x16x96xf32>
    %13 = vector.shape_cast %12 : vector<1x8x16x96xf32> to vector<8x16x96xf32>
    %14 = vector.shape_cast %13 : vector<8x16x96xf32> to vector<128x96xf32>
    %cst_13 = arith.constant dense<0.000000e+00> : vector<128x64xf32>
    %15 = tpu.matmul %14, %2, %cst_13 {dimension_numbers = #tpu.dot_dimension_numbers<[1], [0], [0], [1], [0, 0, 1, 1], [], []>} : vector<128x96xf32>, vector<96x64xf32>, vector<128x64xf32> -> vector<128x64xf32>
    %16 = arith.addf %9, %15 : vector<128x64xf32>
    %c1_i32 = arith.constant 1 : i32
    %17 = arith.addi %8, %c1_i32 : i32
    %c0_14 = arith.constant 0 : index
    %18 = arith.index_cast %17 : i32 to index
    %c0_15 = arith.constant 0 : index
    %c0_16 = arith.constant 0 : index
    %19 = vector.load %arg1[%c0_14, %18, %c0_15, %c0_16] : memref<1x18x16x96xf32, #tpu.memory_space<vmem>>, vector<1x8x16x96xf32>
    %20 = vector.shape_cast %19 : vector<1x8x16x96xf32> to vector<8x16x96xf32>
    %21 = vector.shape_cast %20 : vector<8x16x96xf32> to vector<128x96xf32>
    %cst_17 = arith.constant dense<0.000000e+00> : vector<128x64xf32>
    %22 = tpu.matmul %21, %4, %cst_17 {dimension_numbers = #tpu.dot_dimension_numbers<[1], [0], [0], [1], [0, 0, 1, 1], [], []>} : vector<128x96xf32>, vector<96x64xf32>, vector<128x64xf32> -> vector<128x64xf32>
    %23 = arith.addf %16, %22 : vector<128x64xf32>
    %c2_i32 = arith.constant 2 : i32
    %24 = arith.addi %8, %c2_i32 : i32
    %c0_18 = arith.constant 0 : index
    %25 = arith.index_cast %24 : i32 to index
    %c0_19 = arith.constant 0 : index
    %c0_20 = arith.constant 0 : index
    %26 = vector.load %arg1[%c0_18, %25, %c0_19, %c0_20] : memref<1x18x16x96xf32, #tpu.memory_space<vmem>>, vector<1x8x16x96xf32>
    %27 = vector.shape_cast %26 : vector<1x8x16x96xf32> to vector<8x16x96xf32>
    %28 = vector.shape_cast %27 : vector<8x16x96xf32> to vector<128x96xf32>
    %cst_21 = arith.constant dense<0.000000e+00> : vector<128x64xf32>
    %29 = tpu.matmul %28, %6, %cst_21 {dimension_numbers = #tpu.dot_dimension_numbers<[1], [0], [0], [1], [0, 0, 1, 1], [], []>} : vector<128x96xf32>, vector<96x64xf32>, vector<128x64xf32> -> vector<128x64xf32>
    %30 = arith.addf %23, %29 : vector<128x64xf32>
    %31 = vector.broadcast %0 : vector<1x64xf32> to vector<128x64xf32>
    %32 = arith.addf %30, %31 : vector<128x64xf32>
    %cst_22 = arith.constant 0.000000e+00 : f32
    %33 = vector.broadcast %cst_22 : f32 to vector<128x64xf32>
    %34 = arith.maximumf %32, %33 : vector<128x64xf32>
    %c128_i32 = arith.constant 128 : i32
    %35 = arith.muli %c0_i32, %c128_i32 : i32
    %36 = tpu.assume_multiple %35, 128 : i32
    %37 = arith.index_cast %36 : i32 to index
    %c0_23 = arith.constant 0 : index
    %38 = vector.load %arg11[%37, %c0_23] : memref<256x64xf32, #tpu.memory_space<vmem>>, vector<128x64xf32>
    tpu.vector_store %arg11[%37, %c0_23], %34 {strides = array<i32>} : memref<256x64xf32, #tpu.memory_space<vmem>>, vector<128x64xf32>,
    %cst_24 = arith.constant dense<0.000000e+00> : vector<64xf32>
    %39 = vector.multi_reduction <add>, %34, %cst_24 [0] : vector<128x64xf32> to vector<64xf32>
    %40 = vector.shape_cast %39 : vector<64xf32> to vector<1x64xf32>
    %41 = arith.addf %7, %40 : vector<1x64xf32>
    %c1_i32_25 = arith.constant 1 : i32
    %c8_i32_26 = arith.constant 8 : i32
    %42 = arith.muli %c1_i32_25, %c8_i32_26 : i32
    %cst_27 = arith.constant 0.000000e+00 : f32
    %43 = vector.broadcast %cst_27 : f32 to vector<128x64xf32>
    %c0_i32_28 = arith.constant 0 : i32
    %44 = arith.addi %42, %c0_i32_28 : i32
    %c0_29 = arith.constant 0 : index
    %45 = arith.index_cast %44 : i32 to index
    %c0_30 = arith.constant 0 : index
    %c0_31 = arith.constant 0 : index
    %46 = vector.load %arg1[%c0_29, %45, %c0_30, %c0_31] : memref<1x18x16x96xf32, #tpu.memory_space<vmem>>, vector<1x8x16x96xf32>
    %47 = vector.shape_cast %46 : vector<1x8x16x96xf32> to vector<8x16x96xf32>
    %48 = vector.shape_cast %47 : vector<8x16x96xf32> to vector<128x96xf32>
    %cst_32 = arith.constant dense<0.000000e+00> : vector<128x64xf32>
    %49 = tpu.matmul %48, %2, %cst_32 {dimension_numbers = #tpu.dot_dimension_numbers<[1], [0], [0], [1], [0, 0, 1, 1], [], []>} : vector<128x96xf32>, vector<96x64xf32>, vector<128x64xf32> -> vector<128x64xf32>
    %50 = arith.addf %43, %49 : vector<128x64xf32>
    %c1_i32_33 = arith.constant 1 : i32
    %51 = arith.addi %42, %c1_i32_33 : i32
    %c0_34 = arith.constant 0 : index
    %52 = arith.index_cast %51 : i32 to index
    %c0_35 = arith.constant 0 : index
    %c0_36 = arith.constant 0 : index
    %53 = vector.load %arg1[%c0_34, %52, %c0_35, %c0_36] : memref<1x18x16x96xf32, #tpu.memory_space<vmem>>, vector<1x8x16x96xf32>
    %54 = vector.shape_cast %53 : vector<1x8x16x96xf32> to vector<8x16x96xf32>
    %55 = vector.shape_cast %54 : vector<8x16x96xf32> to vector<128x96xf32>
    %cst_37 = arith.constant dense<0.000000e+00> : vector<128x64xf32>
    %56 = tpu.matmul %55, %4, %cst_37 {dimension_numbers = #tpu.dot_dimension_numbers<[1], [0], [0], [1], [0, 0, 1, 1], [], []>} : vector<128x96xf32>, vector<96x64xf32>, vector<128x64xf32> -> vector<128x64xf32>
    %57 = arith.addf %50, %56 : vector<128x64xf32>
    %c2_i32_38 = arith.constant 2 : i32
    %58 = arith.addi %42, %c2_i32_38 : i32
    %c0_39 = arith.constant 0 : index
    %59 = arith.index_cast %58 : i32 to index
    %c0_40 = arith.constant 0 : index
    %c0_41 = arith.constant 0 : index
    %60 = vector.load %arg1[%c0_39, %59, %c0_40, %c0_41] : memref<1x18x16x96xf32, #tpu.memory_space<vmem>>, vector<1x8x16x96xf32>
    %61 = vector.shape_cast %60 : vector<1x8x16x96xf32> to vector<8x16x96xf32>
    %62 = vector.shape_cast %61 : vector<8x16x96xf32> to vector<128x96xf32>
    %cst_42 = arith.constant dense<0.000000e+00> : vector<128x64xf32>
    %63 = tpu.matmul %62, %6, %cst_42 {dimension_numbers = #tpu.dot_dimension_numbers<[1], [0], [0], [1], [0, 0, 1, 1], [], []>} : vector<128x96xf32>, vector<96x64xf32>, vector<128x64xf32> -> vector<128x64xf32>
    %64 = arith.addf %57, %63 : vector<128x64xf32>
    %65 = vector.broadcast %0 : vector<1x64xf32> to vector<128x64xf32>
    %66 = arith.addf %64, %65 : vector<128x64xf32>
    %cst_43 = arith.constant 0.000000e+00 : f32
    %67 = vector.broadcast %cst_43 : f32 to vector<128x64xf32>
    %68 = arith.maximumf %66, %67 : vector<128x64xf32>
    %c128_i32_44 = arith.constant 128 : i32
    %69 = arith.muli %c1_i32_25, %c128_i32_44 : i32
    %70 = tpu.assume_multiple %69, 128 : i32
    %71 = arith.index_cast %70 : i32 to index
    %c0_45 = arith.constant 0 : index
    %72 = vector.load %arg11[%71, %c0_45] : memref<256x64xf32, #tpu.memory_space<vmem>>, vector<128x64xf32>
    tpu.vector_store %arg11[%71, %c0_45], %68 {strides = array<i32>} : memref<256x64xf32, #tpu.memory_space<vmem>>, vector<128x64xf32>,
    %cst_46 = arith.constant dense<0.000000e+00> : vector<64xf32>
    %73 = vector.multi_reduction <add>, %68, %cst_46 [0] : vector<128x64xf32> to vector<64xf32>
    %74 = vector.shape_cast %73 : vector<64xf32> to vector<1x64xf32>
    %75 = arith.addf %41, %74 : vector<1x64xf32>
    %c2_i32_47 = arith.constant 2 : i32
    %cst_48 = arith.constant 3.906250e-03 : f32
    %76 = vector.broadcast %cst_48 : f32 to vector<1x64xf32>
    %77 = arith.mulf %75, %76 : vector<1x64xf32>
    %c0_49 = arith.constant 0 : index
    %c0_50 = arith.constant 0 : index
    %78 = vector.load %arg4[%c0_49, %c0_50] : memref<64x32xf32, #tpu.memory_space<vmem>>, vector<64x32xf32>
    %cst_51 = arith.constant dense<0.000000e+00> : vector<1x32xf32>
    %79 = tpu.matmul %77, %78, %cst_51 {dimension_numbers = #tpu.dot_dimension_numbers<[1], [0], [0], [1], [0, 0, 1, 1], [], []>} : vector<1x64xf32>, vector<64x32xf32>, vector<1x32xf32> -> vector<1x32xf32>
    %c0_52 = arith.constant 0 : index
    %c0_53 = arith.constant 0 : index
    %80 = vector.load %arg5[%c0_52, %c0_53] : memref<1x32xf32, #tpu.memory_space<vmem>>, vector<1x32xf32>
    %81 = arith.addf %79, %80 : vector<1x32xf32>
    %cst_54 = arith.constant 0.000000e+00 : f32
    %82 = vector.broadcast %cst_54 : f32 to vector<1x32xf32>
    %83 = arith.maximumf %81, %82 : vector<1x32xf32>
    %c0_55 = arith.constant 0 : index
    %c0_56 = arith.constant 0 : index
    %84 = vector.load %arg6[%c0_55, %c0_56] : memref<32x64xf32, #tpu.memory_space<vmem>>, vector<32x64xf32>
    %cst_57 = arith.constant dense<0.000000e+00> : vector<1x64xf32>
    %85 = tpu.matmul %83, %84, %cst_57 {dimension_numbers = #tpu.dot_dimension_numbers<[1], [0], [0], [1], [0, 0, 1, 1], [], []>} : vector<1x32xf32>, vector<32x64xf32>, vector<1x64xf32> -> vector<1x64xf32>
    %c0_58 = arith.constant 0 : index
    %c0_59 = arith.constant 0 : index
    %86 = vector.load %arg7[%c0_58, %c0_59] : memref<1x64xf32, #tpu.memory_space<vmem>>, vector<1x64xf32>
    %87 = arith.addf %85, %86 : vector<1x64xf32>
    %88 = arith.negf %87 : vector<1x64xf32>
    %89 = math.exp %88 : vector<1x64xf32>
    %cst_60 = arith.constant 1.000000e+00 : f32
    %90 = vector.broadcast %cst_60 : f32 to vector<1x64xf32>
    %91 = arith.addf %90, %89 : vector<1x64xf32>
    %92 = arith.divf %90, %91 : vector<1x64xf32>
    %93 = vector.shape_cast %92 : vector<1x64xf32> to vector<1x64xf32>
    %94 = vector.broadcast %93 : vector<1x64xf32> to vector<128x64xf32>
    %c0_61 = arith.constant 0 : index
    %c0_62 = arith.constant 0 : index
    %95 = vector.load %arg8[%c0_61, %c0_62] : memref<1x64xf32, #tpu.memory_space<vmem>>, vector<1x64xf32>
    %96 = vector.shape_cast %95 : vector<1x64xf32> to vector<1x64xf32>
    %97 = vector.broadcast %96 : vector<1x64xf32> to vector<128x64xf32>
    %c0_63 = arith.constant 0 : index
    %c0_64 = arith.constant 0 : index
    %98 = vector.load %arg9[%c0_63, %c0_64] : memref<1x1xf32, #tpu.memory_space<vmem>>, vector<1x1xf32>
    %99 = vector.shape_cast %98 : vector<1x1xf32> to vector<1x1xf32>
    %100 = vector.broadcast %99 : vector<1x1xf32> to vector<128x1xf32>
    %c0_i32_65 = arith.constant 0 : i32
    %c128_i32_66 = arith.constant 128 : i32
    %101 = arith.muli %c0_i32_65, %c128_i32_66 : i32
    %102 = tpu.assume_multiple %101, 128 : i32
    %103 = arith.index_cast %102 : i32 to index
    %c0_67 = arith.constant 0 : index
    %104 = vector.load %arg11[%103, %c0_67] : memref<256x64xf32, #tpu.memory_space<vmem>>, vector<128x64xf32>
    %105 = arith.mulf %104, %97 : vector<128x64xf32>
    %cst_68 = arith.constant dense<0.000000e+00> : vector<128xf32>
    %106 = vector.multi_reduction <add>, %105, %cst_68 [1] : vector<128x64xf32> to vector<128xf32>
    %107 = vector.shape_cast %106 : vector<128xf32> to vector<128x1xf32>
    %108 = arith.addf %107, %100 : vector<128x1xf32>
    %109 = arith.mulf %104, %94 : vector<128x64xf32>
    %110 = arith.negf %108 : vector<128x1xf32>
    %111 = math.exp %110 : vector<128x1xf32>
    %cst_69 = arith.constant 1.000000e+00 : f32
    %112 = vector.broadcast %cst_69 : f32 to vector<128x1xf32>
    %113 = arith.addf %112, %111 : vector<128x1xf32>
    %114 = arith.divf %112, %113 : vector<128x1xf32>
    %115 = vector.broadcast %114 : vector<128x1xf32> to vector<128x64xf32>
    %116 = arith.mulf %104, %115 : vector<128x64xf32>
    %117 = arith.maximumf %109, %116 : vector<128x64xf32>
    %118 = vector.shape_cast %117 : vector<128x64xf32> to vector<8x16x64xf32>
    %c8_i32_70 = arith.constant 8 : i32
    %119 = arith.muli %c0_i32_65, %c8_i32_70 : i32
    %120 = tpu.assume_multiple %119, 8 : i32
    %c0_71 = arith.constant 0 : index
    %121 = arith.index_cast %120 : i32 to index
    %c0_72 = arith.constant 0 : index
    %c0_73 = arith.constant 0 : index
    %122 = vector.load %arg10[%c0_71, %121, %c0_72, %c0_73] : memref<1x16x16x64xf32, #tpu.memory_space<vmem>>, vector<1x8x16x64xf32>
    %123 = vector.shape_cast %122 : vector<1x8x16x64xf32> to vector<8x16x64xf32>
    %124 = vector.shape_cast %118 : vector<8x16x64xf32> to vector<1x8x16x64xf32>
    tpu.vector_store %arg10[%c0_71, %121, %c0_72, %c0_73], %124 {strides = array<i32>} : memref<1x16x16x64xf32, #tpu.memory_space<vmem>>, vector<1x8x16x64xf32>,
    %c1_i32_74 = arith.constant 1 : i32
    %c128_i32_75 = arith.constant 128 : i32
    %125 = arith.muli %c1_i32_74, %c128_i32_75 : i32
    %126 = tpu.assume_multiple %125, 128 : i32
    %127 = arith.index_cast %126 : i32 to index
    %c0_76 = arith.constant 0 : index
    %128 = vector.load %arg11[%127, %c0_76] : memref<256x64xf32, #tpu.memory_space<vmem>>, vector<128x64xf32>
    %129 = arith.mulf %128, %97 : vector<128x64xf32>
    %cst_77 = arith.constant dense<0.000000e+00> : vector<128xf32>
    %130 = vector.multi_reduction <add>, %129, %cst_77 [1] : vector<128x64xf32> to vector<128xf32>
    %131 = vector.shape_cast %130 : vector<128xf32> to vector<128x1xf32>
    %132 = arith.addf %131, %100 : vector<128x1xf32>
    %133 = arith.mulf %128, %94 : vector<128x64xf32>
    %134 = arith.negf %132 : vector<128x1xf32>
    %135 = math.exp %134 : vector<128x1xf32>
    %cst_78 = arith.constant 1.000000e+00 : f32
    %136 = vector.broadcast %cst_78 : f32 to vector<128x1xf32>
    %137 = arith.addf %136, %135 : vector<128x1xf32>
    %138 = arith.divf %136, %137 : vector<128x1xf32>
    %139 = vector.broadcast %138 : vector<128x1xf32> to vector<128x64xf32>
    %140 = arith.mulf %128, %139 : vector<128x64xf32>
    %141 = arith.maximumf %133, %140 : vector<128x64xf32>
    %142 = vector.shape_cast %141 : vector<128x64xf32> to vector<8x16x64xf32>
    %c8_i32_79 = arith.constant 8 : i32
    %143 = arith.muli %c1_i32_74, %c8_i32_79 : i32
    %144 = tpu.assume_multiple %143, 8 : i32
    %c0_80 = arith.constant 0 : index
    %145 = arith.index_cast %144 : i32 to index
    %c0_81 = arith.constant 0 : index
    %c0_82 = arith.constant 0 : index
    %146 = vector.load %arg10[%c0_80, %145, %c0_81, %c0_82] : memref<1x16x16x64xf32, #tpu.memory_space<vmem>>, vector<1x8x16x64xf32>
    %147 = vector.shape_cast %146 : vector<1x8x16x64xf32> to vector<8x16x64xf32>
    %148 = vector.shape_cast %142 : vector<8x16x64xf32> to vector<1x8x16x64xf32>
    tpu.vector_store %arg10[%c0_80, %145, %c0_81, %c0_82], %148 {strides = array<i32>} : memref<1x16x16x64xf32, #tpu.memory_space<vmem>>, vector<1x8x16x64xf32>,
    %c2_i32_83 = arith.constant 2 : i32
    return
  }
  func.func @transform_0(%arg0: i32) -> (i32, i32, i32, i32) {
    %c0_i32 = arith.constant 0 : i32
    %c0_i32_0 = arith.constant 0 : i32
    %c0_i32_1 = arith.constant 0 : i32
    %c0_i32_2 = arith.constant 0 : i32
    return %arg0, %c0_i32, %c0_i32_0, %c0_i32_1 : i32, i32, i32, i32
  }
  func.func @transform_1(%arg0: i32) -> (i32, i32, i32) {
    %c0_i32 = arith.constant 0 : i32
    %c0_i32_0 = arith.constant 0 : i32
    %c0_i32_1 = arith.constant 0 : i32
    %c0_i32_2 = arith.constant 0 : i32
    return %c0_i32, %c0_i32_0, %c0_i32_1 : i32, i32, i32
  }
  func.func @transform_2(%arg0: i32) -> (i32, i32) {
    %c0_i32 = arith.constant 0 : i32
    %c0_i32_0 = arith.constant 0 : i32
    %c0_i32_1 = arith.constant 0 : i32
    return %c0_i32, %c0_i32_0 : i32, i32
  }
  func.func @transform_3(%arg0: i32) -> (i32, i32) {
    %c0_i32 = arith.constant 0 : i32
    %c0_i32_0 = arith.constant 0 : i32
    %c0_i32_1 = arith.constant 0 : i32
    return %c0_i32, %c0_i32_0 : i32, i32
  }
  func.func @transform_4(%arg0: i32) -> (i32, i32) {
    %c0_i32 = arith.constant 0 : i32
    %c0_i32_0 = arith.constant 0 : i32
    %c0_i32_1 = arith.constant 0 : i32
    return %c0_i32, %c0_i32_0 : i32, i32
  }
  func.func @transform_5(%arg0: i32) -> (i32, i32) {
    %c0_i32 = arith.constant 0 : i32
    %c0_i32_0 = arith.constant 0 : i32
    %c0_i32_1 = arith.constant 0 : i32
    return %c0_i32, %c0_i32_0 : i32, i32
  }
  func.func @transform_6(%arg0: i32) -> (i32, i32) {
    %c0_i32 = arith.constant 0 : i32
    %c0_i32_0 = arith.constant 0 : i32
    %c0_i32_1 = arith.constant 0 : i32
    return %c0_i32, %c0_i32_0 : i32, i32
  }
  func.func @transform_7(%arg0: i32) -> (i32, i32) {
    %c0_i32 = arith.constant 0 : i32
    %c0_i32_0 = arith.constant 0 : i32
    %c0_i32_1 = arith.constant 0 : i32
    return %c0_i32, %c0_i32_0 : i32, i32
  }
  func.func @transform_8(%arg0: i32) -> (i32, i32) {
    %c0_i32 = arith.constant 0 : i32
    %c0_i32_0 = arith.constant 0 : i32
    %c0_i32_1 = arith.constant 0 : i32
    return %c0_i32, %c0_i32_0 : i32, i32
  }
  func.func @transform_9(%arg0: i32) -> (i32, i32, i32, i32) {
    %c0_i32 = arith.constant 0 : i32
    %c0_i32_0 = arith.constant 0 : i32
    %c0_i32_1 = arith.constant 0 : i32
    %c0_i32_2 = arith.constant 0 : i32
    return %arg0, %c0_i32, %c0_i32_0, %c0_i32_1 : i32, i32, i32, i32
  }
}

</mosaic_0001>

<llo_original>
// kernel: attention_block_forward.1
$region0: #{attention_block_forward.1}
  #allocation0 [shape = 'u32[]', space=smem, size = 0x4, offset = 0x4, fixed_abs, tag = 'smem constant byte address 0x4 - core index']
  #allocation1 [shape = 'u32[144,128]{1,0:T(1,128)}', space=vmem, size = 0x12000, scoped, tag = 'internal scratch']
  #allocation2 [shape = 'f32[256,64]{1,0:T(8,128)}', space=vmem, size = 0x20000, scoped, tag = 'scratch operand']
  #allocation3 [shape = 'f32[1,1]{1,0:T(1,128)S(1)}', space=vmem, size = 0x200, scoped, tag = 'scoped memory for attention_block_forward.1']
  %s0 = inlined_call_operand.vmem [shape: f32[2,18,16,96], index: 0, kind: input, shape index: {}]
  %s1 = inlined_call_operand.vmem [shape: f32[3,96,64], index: 1, kind: input, shape index: {}]
  %s2 = inlined_call_operand.vmem [shape: f32[1,64], index: 2, kind: input, shape index: {}]
  %s3 = inlined_call_operand.vmem [shape: f32[64,32], index: 3, kind: input, shape index: {}]
  %s4 = inlined_call_operand.vmem [shape: f32[1,32], index: 4, kind: input, shape index: {}]
  %s5 = inlined_call_operand.vmem [shape: f32[32,64], index: 5, kind: input, shape index: {}]
  %s6 = inlined_call_operand.vmem [shape: f32[1,64], index: 6, kind: input, shape index: {}]
  %s7 = inlined_call_operand.vmem [shape: f32[1,64], index: 7, kind: input, shape index: {}]
  %s8 = inlined_call_operand.<no memory space> [shape: f32[1,1], index: 8, kind: input, shape index: {}]
  %s9 = inlined_call_operand.hbm [shape: f32[2,16,16,64], index: 9, kind: output, shape index: {}]
  %s10 = sld [smem:[#allocation0]]
  $region69: #{attention_block_forward.1} parent=0
    _
  %s12 = ssub.s32 1, %s10
  %s13 = scalar_select 0, %s12, %s10
  %v14 = vstv %s8
  %15 = vst [vmem:[#allocation3] sm:$0x1] %v14
  $region1: #{attention_block_forward.1} parent=0
    #allocation4 [shape = 'u8[262144]{0}', space=vmem, size = 0x40000, scoped, tag = 'output window, operand 0']
    #allocation5 [shape = 's32[2]{0}', space=sflag, size = 0x8, scoped, tag = 'scoped memory for attention_block_forward.1']
    %16 = vsyncpa [#allocation5], 0
    %s17 = scalar_lea.sflag [#allocation5], 1
    %18 = vsyncpa %s17, 0
    loop: start=0, step=1, limit=4
    $region2: #{attention_block_forward.1} parent=1 // loop_pre_header
      _
    $region3: #{attention_block_forward.1} parent=1 // loop_header
      %s20 = sphi 0, %s24
      %p21 = scmp.ge.s32.totalorder %s20, 4
      %s30 = sphi 0, %s32
      %s33 = sphi 0, %s30
      %s34 = sphi 0, %s33
      %s50 = sphi 0, %s34
      %s54 = sphi 0, %s54
      %s56 = sphi 0, %s54
      %s57 = sphi 0, %s56
      %s71 = sphi 0, %s57
      %s75 = sphi 0, %s75
      %s77 = sphi 0, %s75
      %s78 = sphi 0, %s77
      %s92 = sphi 0, %s78
      %s96 = sphi 0, %s96
      %s98 = sphi 0, %s96
      %s99 = sphi 0, %s98
      %s113 = sphi 0, %s99
      %s117 = sphi 0, %s117
      %s119 = sphi 0, %s117
      %s120 = sphi 0, %s119
      %s134 = sphi 0, %s120
      %s138 = sphi 0, %s138
      %s140 = sphi 0, %s138
      %s141 = sphi 0, %s140
      %s155 = sphi 0, %s141
      %s159 = sphi 0, %s159
      %s161 = sphi 0, %s159
      %s162 = sphi 0, %s161
      %s176 = sphi 0, %s162
      %s180 = sphi 0, %s180
      %s182 = sphi 0, %s180
      %s183 = sphi 0, %s182
      %s197 = sphi 0, %s183
      %s201 = sphi 0, %s201
      %s203 = sphi 0, %s201
      %s204 = sphi 0, %s203
      %s218 = sphi 0, %s204
      %s224 = sphi 0, %s226
      %s227 = sphi 0, %s224
      %s228 = sphi 0, %s227
      %s244 = sphi 0, %s228
    $region4: #{attention_block_forward.1} parent=1 // loop_header_branch
      %23 = sbr.rel (%p21) target = $region8
    $region5: #{attention_block_forward.1} parent=1 // loop_body
      %s25 = ssub.s32 %s20, 1
      %s26 = ssub.s32 %s20, 2
      %s27 = sadd.s32 %s20, 1
      %s28 = ssub.s32 %s20, %s27
      %p29 = scmp.eq.s32.totalorder %s28, 0
      %s31 = sadd.s32 %s30, 1
      %s32 = scalar_select %p29, %s30, %s31
      %p35 = pneg %p29
      %p36 = scmp.eq.s32.totalorder %s20, 1
      %p37 = por %p35, %p36
      %p38 = scmp.ne.s32.totalorder %s30, %s33
      %p39 = scmp.eq.s32.totalorder %s20, 0
      %p40 = por %p38, %p39
      %p41 = scmp.ne.s32.totalorder %s30, %s33
      %p42 = scmp.eq.s32.totalorder %s25, 1
      %p43 = por %p41, %p42
      %p44 = scmp.ne.s32.totalorder %s33, %s34
      %p45 = scmp.eq.s32.totalorder %s25, 0
      %p46 = por %p44, %p45
      %p47 = scmp.ne.s32.totalorder %s33, %s34
      %p48 = scmp.eq.s32.totalorder %s26, 1
      %p49 = por %p47, %p48
      %p51 = scmp.ne.s32.totalorder %s34, %s50
      %p52 = scmp.eq.s32.totalorder %s26, 0
      %p53 = por %p51, %p52
      %s55 = sadd.s32 %s54, 1
      %p58 = scmp.eq.s32.totalorder %s20, 1
      %p59 = scmp.ne.s32.totalorder %s54, %s56
      %p60 = scmp.eq.s32.totalorder %s20, 0
      %p61 = por %p59, %p60
      %p62 = scmp.ne.s32.totalorder %s54, %s56
      %p63 = scmp.eq.s32.totalorder %s25, 1
      %p64 = por %p62, %p63
      %p65 = scmp.ne.s32.totalorder %s56, %s57
      %p66 = scmp.eq.s32.totalorder %s25, 0
      %p67 = por %p65, %p66
      %p68 = scmp.ne.s32.totalorder %s56, %s57
      %p69 = scmp.eq.s32.totalorder %s26, 1
      %p70 = por %p68, %p69
      %p72 = scmp.ne.s32.totalorder %s57, %s71
      %p73 = scmp.eq.s32.totalorder %s26, 0
      %p74 = por %p72, %p73
      %s76 = sadd.s32 %s75, 1
      %p79 = scmp.eq.s32.totalorder %s20, 1
      %p80 = scmp.ne.s32.totalorder %s75, %s77
      %p81 = scmp.eq.s32.totalorder %s20, 0
      %p82 = por %p80, %p81
      %p83 = scmp.ne.s32.totalorder %s75, %s77
      %p84 = scmp.eq.s32.totalorder %s25, 1
      %p85 = por %p83, %p84
      %p86 = scmp.ne.s32.totalorder %s77, %s78
      %p87 = scmp.eq.s32.totalorder %s25, 0
      %p88 = por %p86, %p87
      %p89 = scmp.ne.s32.totalorder %s77, %s78
      %p90 = scmp.eq.s32.totalorder %s26, 1
      %p91 = por %p89, %p90
      %p93 = scmp.ne.s32.totalorder %s78, %s92
      %p94 = scmp.eq.s32.totalorder %s26, 0
      %p95 = por %p93, %p94
      %s97 = sadd.s32 %s96, 1
      %p100 = scmp.eq.s32.totalorder %s20, 1
      %p101 = scmp.ne.s32.totalorder %s96, %s98
      %p102 = scmp.eq.s32.totalorder %s20, 0
      %p103 = por %p101, %p102
      %p104 = scmp.ne.s32.totalorder %s96, %s98
      %p105 = scmp.eq.s32.totalorder %s25, 1
      %p106 = por %p104, %p105
      %p107 = scmp.ne.s32.totalorder %s98, %s99
      %p108 = scmp.eq.s32.totalorder %s25, 0
      %p109 = por %p107, %p108
      %p110 = scmp.ne.s32.totalorder %s98, %s99
      %p111 = scmp.eq.s32.totalorder %s26, 1
      %p112 = por %p110, %p111
      %p114 = scmp.ne.s32.totalorder %s99, %s113
      %p115 = scmp.eq.s32.totalorder %s26, 0
      %p116 = por %p114, %p115
      %s118 = sadd.s32 %s117, 1
      %p121 = scmp.eq.s32.totalorder %s20, 1
      %p122 = scmp.ne.s32.totalorder %s117, %s119
      %p123 = scmp.eq.s32.totalorder %s20, 0
      %p124 = por %p122, %p123
      %p125 = scmp.ne.s32.totalorder %s117, %s119
      %p126 = scmp.eq.s32.totalorder %s25, 1
      %p127 = por %p125, %p126
      %p128 = scmp.ne.s32.totalorder %s119, %s120
      %p129 = scmp.eq.s32.totalorder %s25, 0
      %p130 = por %p128, %p129
      %p131 = scmp.ne.s32.totalorder %s119, %s120
      %p132 = scmp.eq.s32.totalorder %s26, 1
      %p133 = por %p131, %p132
      %p135 = scmp.ne.s32.totalorder %s120, %s134
      %p136 = scmp.eq.s32.totalorder %s26, 0
      %p137 = por %p135, %p136
      %s139 = sadd.s32 %s138, 1
      %p142 = scmp.eq.s32.totalorder %s20, 1
      %p143 = scmp.ne.s32.totalorder %s138, %s140
      %p144 = scmp.eq.s32.totalorder %s20, 0
      %p145 = por %p143, %p144
      %p146 = scmp.ne.s32.totalorder %s138, %s140
      %p147 = scmp.eq.s32.totalorder %s25, 1
      %p148 = por %p146, %p147
      %p149 = scmp.ne.s32.totalorder %s140, %s141
      %p150 = scmp.eq.s32.totalorder %s25, 0
      %p151 = por %p149, %p150
      %p152 = scmp.ne.s32.totalorder %s140, %s141
      %p153 = scmp.eq.s32.totalorder %s26, 1
      %p154 = por %p152, %p153
      %p156 = scmp.ne.s32.totalorder %s141, %s155
      %p157 = scmp.eq.s32.totalorder %s26, 0
      %p158 = por %p156, %p157
      %s160 = sadd.s32 %s159, 1
      %p163 = scmp.eq.s32.totalorder %s20, 1
      %p164 = scmp.ne.s32.totalorder %s159, %s161
      %p165 = scmp.eq.s32.totalorder %s20, 0
      %p166 = por %p164, %p165
      %p167 = scmp.ne.s32.totalorder %s159, %s161
      %p168 = scmp.eq.s32.totalorder %s25, 1
      %p169 = por %p167, %p168
      %p170 = scmp.ne.s32.totalorder %s161, %s162
      %p171 = scmp.eq.s32.totalorder %s25, 0
      %p172 = por %p170, %p171
      %p173 = scmp.ne.s32.totalorder %s161, %s162
      %p174 = scmp.eq.s32.totalorder %s26, 1
      %p175 = por %p173, %p174
      %p177 = scmp.ne.s32.totalorder %s162, %s176
      %p178 = scmp.eq.s32.totalorder %s26, 0
      %p179 = por %p177, %p178
      %s181 = sadd.s32 %s180, 1
      %p184 = scmp.eq.s32.totalorder %s20, 1
      %p185 = scmp.ne.s32.totalorder %s180, %s182
      %p186 = scmp.eq.s32.totalorder %s20, 0
      %p187 = por %p185, %p186
      %p188 = scmp.ne.s32.totalorder %s180, %s182
      %p189 = scmp.eq.s32.totalorder %s25, 1
      %p190 = por %p188, %p189
      %p191 = scmp.ne.s32.totalorder %s182, %s183
      %p192 = scmp.eq.s32.totalorder %s25, 0
      %p193 = por %p191, %p192
      %p194 = scmp.ne.s32.totalorder %s182, %s183
      %p195 = scmp.eq.s32.totalorder %s26, 1
      %p196 = por %p194, %p195
      %p198 = scmp.ne.s32.totalorder %s183, %s197
      %p199 = scmp.eq.s32.totalorder %s26, 0
      %p200 = por %p198, %p199
      %s202 = sadd.s32 %s201, 1
      %p205 = scmp.eq.s32.totalorder %s20, 1
      %p206 = scmp.ne.s32.totalorder %s201, %s203
      %p207 = scmp.eq.s32.totalorder %s20, 0
      %p208 = por %p206, %p207
      %p209 = scmp.ne.s32.totalorder %s201, %s203
      %p210 = scmp.eq.s32.totalorder %s25, 1
      %p211 = por %p209, %p210
      %p212 = scmp.ne.s32.totalorder %s203, %s204
      %p213 = scmp.eq.s32.totalorder %s25, 0
      %p214 = por %p212, %p213
      %p215 = scmp.ne.s32.totalorder %s203, %s204
      %p216 = scmp.eq.s32.totalorder %s26, 1
      %p217 = por %p215, %p216
      %p219 = scmp.ne.s32.totalorder %s204, %s218
      %p220 = scmp.eq.s32.totalorder %s26, 0
      %p221 = por %p219, %p220
      %s222 = ssub.s32 %s20, %s27
      %p223 = scmp.eq.s32.totalorder %s222, 0
      %s225 = sadd.s32 %s224, 1
      %s226 = scalar_select %p223, %s224, %s225
      %p229 = pneg %p223
      %p230 = scmp.eq.s32.totalorder %s20, 1
      %p231 = por %p229, %p230
      %p232 = scmp.ne.s32.totalorder %s224, %s227
      %p233 = scmp.eq.s32.totalorder %s20, 0
      %p234 = por %p232, %p233
      %p235 = scmp.ne.s32.totalorder %s224, %s227
      %p236 = scmp.eq.s32.totalorder %s25, 1
      %p237 = por %p235, %p236
      %p238 = scmp.ne.s32.totalorder %s227, %s228
      %p239 = scmp.eq.s32.totalorder %s25, 0
      %p240 = por %p238, %p239
      %p241 = scmp.ne.s32.totalorder %s227, %s228
      %p242 = scmp.eq.s32.totalorder %s26, 1
      %p243 = por %p241, %p242
      %p245 = scmp.ne.s32.totalorder %s228, %s244
      %p246 = scmp.eq.s32.totalorder %s26, 0
      %p247 = por %p245, %p246
      %p248 = scmp.le.s32.totalorder 1, %s20
      %p249 = scmp.lt.s32.totalorder %s20, 3
      %p250 = pnand %p248, %p249
      %p251 = pneg %p250
      // Predicated region
      $region9: #{attention_block_forward.1} parent=5 // pred_check
        _
      $region10: #{attention_block_forward.1} parent=5 // pred_check_branch
        %253 = sbr.rel (%p250) target = $region12
      $region11: #{attention_block_forward.1} parent=5 // pred_region
        %s254 = ssub.s32 %s20, 1
        // Predicated region
        $region13: #{attention_block_forward.1} parent=11 // pred_check
          %p255 = pneg %p67
        $region14: #{attention_block_forward.1} parent=11 // pred_check_branch
          %257 = sbr.rel (%p255) target = $region16
        $region15: #{attention_block_forward.1} parent=11 // pred_region
          _
        $region16: #{attention_block_forward.1} parent=11 // pred_fallthru
          _
        // Predicated region
        $region17: #{attention_block_forward.1} parent=11 // pred_check
          %p258 = pneg %p88
        $region18: #{attention_block_forward.1} parent=11 // pred_check_branch
          %260 = sbr.rel (%p258) target = $region20
        $region19: #{attention_block_forward.1} parent=11 // pred_region
          _
        $region20: #{attention_block_forward.1} parent=11 // pred_fallthru
          _
        // Predicated region
        $region21: #{attention_block_forward.1} parent=11 // pred_check
          %p261 = pneg %p109
        $region22: #{attention_block_forward.1} parent=11 // pred_check_branch
          %263 = sbr.rel (%p261) target = $region24
        $region23: #{attention_block_forward.1} parent=11 // pred_region
          _
        $region24: #{attention_block_forward.1} parent=11 // pred_fallthru
          _
        // Predicated region
        $region25: #{attention_block_forward.1} parent=11 // pred_check
          %p264 = pneg %p130
        $region26: #{attention_block_forward.1} parent=11 // pred_check_branch
          %266 = sbr.rel (%p264) target = $region28
        $region27: #{attention_block_forward.1} parent=11 // pred_region
          _
        $region28: #{attention_block_forward.1} parent=11 // pred_fallthru
          _
        // Predicated region
        $region29: #{attention_block_forward.1} parent=11 // pred_check
          %p267 = pneg %p151
        $region30: #{attention_block_forward.1} parent=11 // pred_check_branch
          %269 = sbr.rel (%p267) target = $region32
        $region31: #{attention_block_forward.1} parent=11 // pred_region
          _
        $region32: #{attention_block_forward.1} parent=11 // pred_fallthru
          _
        // Predicated region
        $region33: #{attention_block_forward.1} parent=11 // pred_check
          %p270 = pneg %p172
        $region34: #{attention_block_forward.1} parent=11 // pred_check_branch
          %272 = sbr.rel (%p270) target = $region36
        $region35: #{attention_block_forward.1} parent=11 // pred_region
          _
        $region36: #{attention_block_forward.1} parent=11 // pred_fallthru
          _
        // Predicated region
        $region37: #{attention_block_forward.1} parent=11 // pred_check
          %p273 = pneg %p193
        $region38: #{attention_block_forward.1} parent=11 // pred_check_branch
          %275 = sbr.rel (%p273) target = $region40
        $region39: #{attention_block_forward.1} parent=11 // pred_region
          _
        $region40: #{attention_block_forward.1} parent=11 // pred_fallthru
          _
        // Predicated region
        $region41: #{attention_block_forward.1} parent=11 // pred_check
          %p276 = pneg %p214
        $region42: #{attention_block_forward.1} parent=11 // pred_check_branch
          %278 = sbr.rel (%p276) target = $region44
        $region43: #{attention_block_forward.1} parent=11 // pred_region
          _
        $region44: #{attention_block_forward.1} parent=11 // pred_fallthru
          _
      $region12: #{attention_block_forward.1} parent=5 // pred_fallthru
        _
      %p279 = scmp.lt.s32.totalorder %s20, 2
      // Predicated region
      $region45: #{attention_block_forward.1} parent=5 // pred_check
        %p280 = pneg %p279
      $region46: #{attention_block_forward.1} parent=5 // pred_check_branch
        %282 = sbr.rel (%p280) target = $region48
      $region47: #{attention_block_forward.1} parent=5 // pred_region
        // Predicated region
        $region49: #{attention_block_forward.1} parent=47 // pred_check
          %p283 = pneg %p40
        $region50: #{attention_block_forward.1} parent=47 // pred_check_branch
          %285 = sbr.rel (%p283) target = $region52
        $region51: #{attention_block_forward.1} parent=47 // pred_region
          %p286 = scmp.lt.s32.totalorder %s20, 1
          %s287 = scalar_select %p286, %s20, 1
          %s288 = smul.addr %s287, 36
          %s289 = smul.addr %s288, 8
          %s290 = scalar_lea.vmem %s0, %s289
        $region52: #{attention_block_forward.1} parent=47 // pred_fallthru
          _
      $region48: #{attention_block_forward.1} parent=5 // pred_fallthru
        _
      %p291 = scmp.le.s32.totalorder 1, %s20
      %p292 = scmp.lt.s32.totalorder %s20, 3
      %p293 = pnand %p291, %p292
      %p294 = pneg %p293
      // Predicated region
      $region53: #{attention_block_forward.1} parent=5 // pred_check
        _
      $region54: #{attention_block_forward.1} parent=5 // pred_check_branch
        %296 = sbr.rel (%p293) target = $region56
      $region55: #{attention_block_forward.1} parent=5 // pred_region
        %s297 = ssub.s32 %s20, 1
        %p298 = scmp.lt.s32.totalorder %s25, 1
        %s299 = scalar_select %p298, %s25, 1
        %s300 = smul.addr %s299, 36
        %s301 = smul.addr %s300, 8
        %s302 = scalar_lea.vmem %s0, %s301
        %p303 = pneg %p46
        %p304 = pneg %p43
        %p305 = pneg %p67
        %p306 = pneg %p64
        %p307 = pneg %p88
        %p308 = pneg %p85
        %p309 = pneg %p109
        %p310 = pneg %p106
        %p311 = pneg %p130
        %p312 = pneg %p127
        %p313 = pneg %p151
        %p314 = pneg %p148
        %p315 = pneg %p172
        %p316 = pneg %p169
        %p317 = pneg %p193
        %p318 = pneg %p190
        %p319 = pneg %p214
        %p320 = pneg %p211
        %p321 = pneg %p240
        %p322 = pneg %p237
        %s323 = sand.u32 %s227, 1
        %s324 = scalar_lea.sflag [#allocation5], %s323
        %s325 = sand.u32 %s227, 1
        %s326 = smul.addr %s325, 256
        %s327 = scalar_lea.vmem [#allocation4], %s326
        %p328 = scmp.lt.s32.totalorder %s25, 1
        %s329 = scalar_select %p328, %s25, 1
        %s330 = smul.addr %s329, 36
        %s331 = smul.addr %s330, 8
        %s332 = scalar_lea.vmem %s0, %s331
        %v333 = vld [vmem:[%s2] sm:$0x1]
        %v334 = vld [vmem:[%s1] sm:$0xff]
        %v335 = vld [vmem:[%s1 + $0x8] sm:$0xff]
        %v336 = vld [vmem:[%s1 + $0x10] sm:$0xff]
        %v337 = vld [vmem:[%s1 + $0x18] sm:$0xff]
        %v338 = vld [vmem:[%s1 + $0x20] sm:$0xff]
        %v339 = vld [vmem:[%s1 + $0x28] sm:$0xff]
        %v340 = vld [vmem:[%s1 + $0x30] sm:$0xff]
        %v341 = vld [vmem:[%s1 + $0x38] sm:$0xff]
        %v342 = vld [vmem:[%s1 + $0x40] sm:$0xff]
        %v343 = vld [vmem:[%s1 + $0x48] sm:$0xff]
        %v344 = vld [vmem:[%s1 + $0x50] sm:$0xff]
        %v345 = vld [vmem:[%s1 + $0x58] sm:$0xff]
        %s346 = scalar_lea.vmem %s1, 96
        %v347 = vld [vmem:[%s346] sm:$0xff]
        %v348 = vld [vmem:[%s346 + $0x8] sm:$0xff]
        %v349 = vld [vmem:[%s346 + $0x10] sm:$0xff]
        %v350 = vld [vmem:[%s346 + $0x18] sm:$0xff]
        %v351 = vld [vmem:[%s346 + $0x20] sm:$0xff]
        %v352 = vld [vmem:[%s346 + $0x28] sm:$0xff]
        %v353 = vld [vmem:[%s346 + $0x30] sm:$0xff]
        %v354 = vld [vmem:[%s346 + $0x38] sm:$0xff]
        %v355 = vld [vmem:[%s346 + $0x40] sm:$0xff]
        %v356 = vld [vmem:[%s346 + $0x48] sm:$0xff]
        %v357 = vld [vmem:[%s346 + $0x50] sm:$0xff]
        %v358 = vld [vmem:[%s346 + $0x58] sm:$0xff]
        %s359 = scalar_lea.vmem %s1, 192
        %v360 = vld [vmem:[%s359] sm:$0xff]
        %v361 = vld [vmem:[%s359 + $0x8] sm:$0xff]
        %v362 = vld [vmem:[%s359 + $0x10] sm:$0xff]
        %v363 = vld [vmem:[%s359 + $0x18] sm:$0xff]
        %v364 = vld [vmem:[%s359 + $0x20] sm:$0xff]
        %v365 = vld [vmem:[%s359 + $0x28] sm:$0xff]
        %v366 = vld [vmem:[%s359 + $0x30] sm:$0xff]
        %v367 = vld [vmem:[%s359 + $0x38] sm:$0xff]
        %v368 = vld [vmem:[%s359 + $0x40] sm:$0xff]
        %v369 = vld [vmem:[%s359 + $0x48] sm:$0xff]
        %v370 = vld [vmem:[%s359 + $0x50] sm:$0xff]
        %v371 = vld [vmem:[%s359 + $0x58] sm:$0xff]
        %v372 = vld [vmem:[%s332] sm:$0xff]
        %v373 = vld [vmem:[%s332 + $0x8] sm:$0xff]
        %v374 = vld [vmem:[%s332 + $0x10] sm:$0xff]
        %v375 = vld [vmem:[%s332 + $0x18] sm:$0xff]
        %v376 = vld [vmem:[%s332 + $0x20] sm:$0xff]
        %v377 = vld [vmem:[%s332 + $0x28] sm:$0xff]
        %v378 = vld [vmem:[%s332 + $0x30] sm:$0xff]
        %v379 = vld [vmem:[%s332 + $0x38] sm:$0xff]
        %v380 = vld [vmem:[%s332 + $0x40] sm:$0xff]
        %v381 = vld [vmem:[%s332 + $0x48] sm:$0xff]
        %v382 = vld [vmem:[%s332 + $0x50] sm:$0xff]
        %v383 = vld [vmem:[%s332 + $0x58] sm:$0xff]
        %v384 = vld [vmem:[%s332 + $0x60] sm:$0xff]
        %v385 = vld [vmem:[%s332 + $0x68] sm:$0xff]
        %v386 = vld [vmem:[%s332 + $0x70] sm:$0xff]
        %v387 = vld [vmem:[%s332 + $0x78] sm:$0xff]
        %s388 = scalar_lea.vmem %s332, 16
        %v389 = vld [vmem:[%s388] sm:$0xff]
        %v390 = vld [vmem:[%s388 + $0x8] sm:$0xff]
        %v391 = vld [vmem:[%s388 + $0x10] sm:$0xff]
        %v392 = vld [vmem:[%s388 + $0x18] sm:$0xff]
        %v393 = vld [vmem:[%s388 + $0x20] sm:$0xff]
        %v394 = vld [vmem:[%s388 + $0x28] sm:$0xff]
        %v395 = vld [vmem:[%s388 + $0x30] sm:$0xff]
        %v396 = vld [vmem:[%s388 + $0x38] sm:$0xff]
        %v397 = vld [vmem:[%s388 + $0x40] sm:$0xff]
        %v398 = vld [vmem:[%s388 + $0x48] sm:$0xff]
        %v399 = vld [vmem:[%s388 + $0x50] sm:$0xff]
        %v400 = vld [vmem:[%s388 + $0x58] sm:$0xff]
        %v401 = vld [vmem:[%s388 + $0x60] sm:$0xff]
        %v402 = vld [vmem:[%s388 + $0x68] sm:$0xff]
        %v403 = vld [vmem:[%s388 + $0x70] sm:$0xff]
        %v404 = vld [vmem:[%s388 + $0x78] sm:$0xff]
        %vm405 = vcmask 785408
        %v407 = vsel %vm405, %v389, 0
        %v410 = vsel %vm405, %v390, 0
        %v413 = vsel %vm405, %v391, 0
        %v416 = vsel %vm405, %v392, 0
        %v419 = vsel %vm405, %v393, 0
        %v422 = vsel %vm405, %v394, 0
        %v425 = vsel %vm405, %v395, 0
        %v428 = vsel %vm405, %v396, 0
        %v431 = vsel %vm405, %v397, 0
        %v434 = vsel %vm405, %v398, 0
        %v437 = vsel %vm405, %v399, 0
        %v440 = vsel %vm405, %v400, 0
        %v443 = vsel %vm405, %v401, 0
        %v446 = vsel %vm405, %v402, 0
        %v449 = vsel %vm405, %v403, 0
        %v452 = vsel %vm405, %v404, 0
        %454 = vmatprep.subr.mxu0 0.0
        %455 = vmatpush1.msra.mxu0 %v347
        %456 = vmatprep.subr.mxu0 0.0
        %457 = vmatpush1.msra.mxu0 %v348
        %458 = vmatprep.subr.mxu0 0.0
        %459 = vmatpush1.msra.mxu0 %v349
        %460 = vmatprep.subr.mxu0 0.0
        %461 = vmatpush1.msra.mxu0 %v350
        %462 = vmatprep.subr.mxu0 0.0
        %463 = vmatpush1.msra.mxu0 %v351
        %464 = vmatprep.subr.mxu0 0.0
        %465 = vmatpush1.msra.mxu0 %v352
        %466 = vmatprep.subr.mxu0 0.0
        %467 = vmatpush1.msra.mxu0 %v353
        %468 = vmatprep.subr.mxu0 0.0
        %469 = vmatpush1.msra.mxu0 %v354
        %470 = vmatprep.subr.mxu0 0.0
        %471 = vmatpush1.msra.mxu0 %v355
        %472 = vmatprep.subr.mxu0 0.0
        %473 = vmatpush1.msra.mxu0 %v356
        %474 = vmatprep.subr.mxu0 0.0
        %475 = vmatpush1.msra.mxu0 %v357
        %476 = vmatprep.subr.mxu0 0.0
        %477 = vmatpush1.msra.mxu0 %v358
        %478 = vmatprep.subr.mxu0 0.0
        %479 = vmatpush1.msra.mxu0 0.0
        %480 = vmatprep.subr.mxu0 0.0
        %481 = vmatpush1.msra.mxu0 0.0
        %482 = vmatprep.subr.mxu0 0.0
        %483 = vmatpush1.msra.mxu0 0.0
        %484 = vmatprep.subr.mxu0 0.0
        %485 = vmatpush1.msra.mxu0 0.0
        %486 = vmatprep.subr.mxu0 0.0
        %487 = vmatpush1.msra.mxu0 0.0
        %488 = vmatprep.subr.mxu0 0.0
        %489 = vmatpush1.msra.mxu0 0.0
        %490 = vmatprep.subr.mxu0 0.0
        %491 = vmatpush1.msra.mxu0 0.0
        %492 = vmatprep.subr.mxu0 0.0
        %493 = vmatpush1.msra.mxu0 0.0
        %494 = vmatprep.subr.mxu0 0.0
        %495 = vmatpush1.msra.mxu0 0.0
        %496 = vmatprep.subr.mxu0 0.0
        %497 = vmatpush1.msra.mxu0 0.0
        %498 = vmatprep.subr.mxu0 0.0
        %499 = vmatpush1.msra.mxu0 0.0
        %500 = vmatprep.subr.mxu0 0.0
        %501 = vmatpush1.msra.mxu0 0.0
        %502 = vmatprep.subr.mxu0 0.0
        %503 = vmatpush1.msra.mxu0 0.0
        %504 = vmatprep.subr.mxu0 0.0
        %505 = vmatpush1.msra.mxu0 0.0
        %506 = vmatprep.subr.mxu0 0.0
        %507 = vmatpush1.msra.mxu0 0.0
        %508 = vmatprep.subr.mxu0 0.0
        %509 = vmatpush1.msra.mxu0 0.0
        %510 = vmatprep.subr.mxu0 0.0
        %511 = vmatpush1.msra.mxu0 0.0
        %512 = vmatprep.subr.mxu0 0.0
        %513 = vmatpush1.msra.mxu0 0.0
        %514 = vmatprep.subr.mxu0 0.0
        %515 = vmatpush1.msra.mxu0 0.0
        %516 = vmatprep.subr.mxu0 0.0
        %517 = vmatpush1.msra.mxu0 0.0
        %518 = vmatprep.mubr.f32.mxu0 0.0
        %519 = vmatmul.mubr.f32.gmra.mrb[0].mxu0 %v407
        %v520 = vpop.f32.mrb[0].mxu0
        %v521 = vadd.f32 0.0, %v520
        %v522 = vpop.f32.mrb[0].mxu0
        %523 = vmatprep.mubr.f32.mxu0 0.0
        %524 = vmatmul.mubr.f32.gmra.mrb[0].mxu0 %v410
        %v525 = vpop.f32.mrb[0].mxu0
        %v526 = vadd.f32 0.0, %v525
        %v527 = vpop.f32.mrb[0].mxu0
        %528 = vmatprep.mubr.f32.mxu0 0.0
        %529 = vmatmul.mubr.f32.gmra.mrb[0].mxu0 %v413
        %v530 = vpop.f32.mrb[0].mxu0
        %v531 = vadd.f32 0.0, %v530
        %v532 = vpop.f32.mrb[0].mxu0
        %533 = vmatprep.mubr.f32.mxu0 0.0
        %534 = vmatmul.mubr.f32.gmra.mrb[0].mxu0 %v416
        %v535 = vpop.f32.mrb[0].mxu0
        %v536 = vadd.f32 0.0, %v535
        %v537 = vpop.f32.mrb[0].mxu0
        %538 = vmatprep.mubr.f32.mxu0 0.0
        %539 = vmatmul.mubr.f32.gmra.mrb[0].mxu0 %v419
        %v540 = vpop.f32.mrb[0].mxu0
        %v541 = vadd.f32 0.0, %v540
        %v542 = vpop.f32.mrb[0].mxu0
        %543 = vmatprep.mubr.f32.mxu0 0.0
        %544 = vmatmul.mubr.f32.gmra.mrb[0].mxu0 %v422
        %v545 = vpop.f32.mrb[0].mxu0
        %v546 = vadd.f32 0.0, %v545
        %v547 = vpop.f32.mrb[0].mxu0
        %548 = vmatprep.mubr.f32.mxu0 0.0
        %549 = vmatmul.mubr.f32.gmra.mrb[0].mxu0 %v425
        %v550 = vpop.f32.mrb[0].mxu0
        %v551 = vadd.f32 0.0, %v550
        %v552 = vpop.f32.mrb[0].mxu0
        %553 = vmatprep.mubr.f32.mxu0 0.0
        %554 = vmatmul.mubr.f32.gmra.mrb[0].mxu0 %v428
        %v555 = vpop.f32.mrb[0].mxu0
        %v556 = vadd.f32 0.0, %v555
        %v557 = vpop.f32.mrb[0].mxu0
        %558 = vmatprep.mubr.f32.mxu0 0.0
        %559 = vmatmul.mubr.f32.gmra.mrb[0].mxu0 %v431
        %v560 = vpop.f32.mrb[0].mxu0
        %v561 = vadd.f32 0.0, %v560
        %v562 = vpop.f32.mrb[0].mxu0
        %563 = vmatprep.mubr.f32.mxu0 0.0
        %564 = vmatmul.mubr.f32.gmra.mrb[0].mxu0 %v434
        %v565 = vpop.f32.mrb[0].mxu0
        %v566 = vadd.f32 0.0, %v565
        %v567 = vpop.f32.mrb[0].mxu0
        %568 = vmatprep.mubr.f32.mxu0 0.0
        %569 = vmatmul.mubr.f32.gmra.mrb[0].mxu0 %v437
        %v570 = vpop.f32.mrb[0].mxu0
        %v571 = vadd.f32 0.0, %v570
        %v572 = vpop.f32.mrb[0].mxu0
        %573 = vmatprep.mubr.f32.mxu0 0.0
        %574 = vmatmul.mubr.f32.gmra.mrb[0].mxu0 %v440
        %v575 = vpop.f32.mrb[0].mxu0
        %v576 = vadd.f32 0.0, %v575
        %v577 = vpop.f32.mrb[0].mxu0
        %578 = vmatprep.mubr.f32.mxu0 0.0
        %579 = vmatmul.mubr.f32.gmra.mrb[0].mxu0 %v443
        %v580 = vpop.f32.mrb[0].mxu0
        %v581 = vadd.f32 0.0, %v580
        %v582 = vpop.f32.mrb[0].mxu0
        %583 = vmatprep.mubr.f32.mxu0 0.0
        %584 = vmatmul.mubr.f32.gmra.mrb[0].mxu0 %v446
        %v585 = vpop.f32.mrb[0].mxu0
        %v586 = vadd.f32 0.0, %v585
        %v587 = vpop.f32.mrb[0].mxu0
        %588 = vmatprep.mubr.f32.mxu0 0.0
        %589 = vmatmul.mubr.f32.gmra.mrb[0].mxu0 %v449
        %v590 = vpop.f32.mrb[0].mxu0
        %v591 = vadd.f32 0.0, %v590
        %v592 = vpop.f32.mrb[0].mxu0
        %593 = vmatprep.mubr.f32.mxu0 0.0
        %594 = vmatmul.mubr.f32.gmra.mrb[0].mxu0 %v452
        %v595 = vpop.f32.mrb[0].mxu0
        %v596 = vadd.f32 0.0, %v595
        %v597 = vpop.f32.mrb[0].mxu0
        %598 = vdwg.mxu0
        %v600 = vsel %vm405, %v372, 0
        %v603 = vsel %vm405, %v373, 0
        %v606 = vsel %vm405, %v374, 0
        %v609 = vsel %vm405, %v375, 0
        %v612 = vsel %vm405, %v376, 0
        %v615 = vsel %vm405, %v377, 0
        %v618 = vsel %vm405, %v378, 0
        %v621 = vsel %vm405, %v379, 0
        %v624 = vsel %vm405, %v380, 0
        %v627 = vsel %vm405, %v381, 0
        %v630 = vsel %vm405, %v382, 0
        %v633 = vsel %vm405, %v383, 0
        %v636 = vsel %vm405, %v384, 0
        %v639 = vsel %vm405, %v385, 0
        %v642 = vsel %vm405, %v386, 0
        %v645 = vsel %vm405, %v387, 0
        %647 = vmatprep.subr.mxu0 0.0
        %648 = vmatpush1.msra.mxu0 %v334
        %649 = vmatprep.subr.mxu0 0.0
        %650 = vmatpush1.msra.mxu0 %v335
        %651 = vmatprep.subr.mxu0 0.0
        %652 = vmatpush1.msra.mxu0 %v336
        %653 = vmatprep.subr.mxu0 0.0
        %654 = vmatpush1.msra.mxu0 %v337
        %655 = vmatprep.subr.mxu0 0.0
        %656 = vmatpush1.msra.mxu0 %v338
        %657 = vmatprep.subr.mxu0 0.0
        %658 = vmatpush1.msra.mxu0 %v339
        %659 = vmatprep.subr.mxu0 0.0
        %660 = vmatpush1.msra.mxu0 %v340
        %661 = vmatprep.subr.mxu0 0.0
        %662 = vmatpush1.msra.mxu0 %v341
        %663 = vmatprep.subr.mxu0 0.0
        %664 = vmatpush1.msra.mxu0 %v342
        %665 = vmatprep.subr.mxu0 0.0
        %666 = vmatpush1.msra.mxu0 %v343
        %667 = vmatprep.subr.mxu0 0.0
        %668 = vmatpush1.msra.mxu0 %v344
        %669 = vmatprep.subr.mxu0 0.0
        %670 = vmatpush1.msra.mxu0 %v345
        %671 = vmatprep.subr.mxu0 0.0
        %672 = vmatpush1.msra.mxu0 0.0
        %673 = vmatprep.subr.mxu0 0.0
        %674 = vmatpush1.msra.mxu0 0.0
        %675 = vmatprep.subr.mxu0 0.0
        %676 = vmatpush1.msra.mxu0 0.0
        %677 = vmatprep.subr.mxu0 0.0
        %678 = vmatpush1.msra.mxu0 0.0
        %679 = vmatprep.subr.mxu0 0.0
        %680 = vmatpush1.msra.mxu0 0.0
        %681 = vmatprep.subr.mxu0 0.0
        %682 = vmatpush1.msra.mxu0 0.0
        %683 = vmatprep.subr.mxu0 0.0
        %684 = vmatpush1.msra.mxu0 0.0
        %685 = vmatprep.subr.mxu0 0.0
        %686 = vmatpush1.msra.mxu0 0.0
        %687 = vmatprep.subr.mxu0 0.0
        %688 = vmatpush1.msra.mxu0 0.0
        %689 = vmatprep.subr.mxu0 0.0
        %690 = vmatpush1.msra.mxu0 0.0
        %691 = vmatprep.subr.mxu0 0.0
        %692 = vmatpush1.msra.mxu0 0.0
        %693 = vmatprep.subr.mxu0 0.0
        %694 = vmatpush1.msra.mxu0 0.0
        %695 = vmatprep.subr.mxu0 0.0
        %696 = vmatpush1.msra.mxu0 0.0
        %697 = vmatprep.subr.mxu0 0.0
        %698 = vmatpush1.msra.mxu0 0.0
        %699 = vmatprep.subr.mxu0 0.0
        %700 = vmatpush1.msra.mxu0 0.0
        %701 = vmatprep.subr.mxu0 0.0
        %702 = vmatpush1.msra.mxu0 0.0
        %703 = vmatprep.subr.mxu0 0.0
        %704 = vmatpush1.msra.mxu0 0.0
        %705 = vmatprep.subr.mxu0 0.0
        %706 = vmatpush1.msra.mxu0 0.0
        %707 = vmatprep.subr.mxu0 0.0
        %708 = vmatpush1.msra.mxu0 0.0
        %709 = vmatprep.subr.mxu0 0.0
        %710 = vmatpush1.msra.mxu0 0.0
        %711 = vmatprep.mubr.f32.mxu0 0.0
        %712 = vmatmul.mubr.f32.gmra.mrb[0].mxu0 %v600
        %v713 = vpop.f32.mrb[0].mxu0
        %v714 = vadd.f32 %v521, %v713
        %v715 = vpop.f32.mrb[0].mxu0
        %716 = vmatprep.mubr.f32.mxu0 0.0
        %717 = vmatmul.mubr.f32.gmra.mrb[0].mxu0 %v603
        %v718 = vpop.f32.mrb[0].mxu0
        %v719 = vadd.f32 %v526, %v718
        %v720 = vpop.f32.mrb[0].mxu0
        %721 = vmatprep.mubr.f32.mxu0 0.0
        %722 = vmatmul.mubr.f32.gmra.mrb[0].mxu0 %v606
        %v723 = vpop.f32.mrb[0].mxu0
        %v724 = vadd.f32 %v531, %v723
        %v725 = vpop.f32.mrb[0].mxu0
        %726 = vmatprep.mubr.f32.mxu0 0.0
        %727 = vmatmul.mubr.f32.gmra.mrb[0].mxu0 %v609
        %v728 = vpop.f32.mrb[0].mxu0
        %v729 = vadd.f32 %v536, %v728
        %v730 = vpop.f32.mrb[0].mxu0
        %731 = vmatprep.mubr.f32.mxu0 0.0
        %732 = vmatmul.mubr.f32.gmra.mrb[0].mxu0 %v612
        %v733 = vpop.f32.mrb[0].mxu0
        %v734 = vadd.f32 %v541, %v733
        %v735 = vpop.f32.mrb[0].mxu0
        %736 = vmatprep.mubr.f32.mxu0 0.0
        %737 = vmatmul.mubr.f32.gmra.mrb[0].mxu0 %v615
        %v738 = vpop.f32.mrb[0].mxu0
        %v739 = vadd.f32 %v546, %v738
        %v740 = vpop.f32.mrb[0].mxu0
        %741 = vmatprep.mubr.f32.mxu0 0.0
        %742 = vmatmul.mubr.f32.gmra.mrb[0].mxu0 %v618
        %v743 = vpop.f32.mrb[0].mxu0
        %v744 = vadd.f32 %v551, %v743
        %v745 = vpop.f32.mrb[0].mxu0
        %746 = vmatprep.mubr.f32.mxu0 0.0
        %747 = vmatmul.mubr.f32.gmra.mrb[0].mxu0 %v621
        %v748 = vpop.f32.mrb[0].mxu0
        %v749 = vadd.f32 %v556, %v748
        %v750 = vpop.f32.mrb[0].mxu0
        %751 = vmatprep.mubr.f32.mxu0 0.0
        %752 = vmatmul.mubr.f32.gmra.mrb[0].mxu0 %v624
        %v753 = vpop.f32.mrb[0].mxu0
        %v754 = vadd.f32 %v561, %v753
        %v755 = vpop.f32.mrb[0].mxu0
        %756 = vmatprep.mubr.f32.mxu0 0.0
        %757 = vmatmul.mubr.f32.gmra.mrb[0].mxu0 %v627
        %v758 = vpop.f32.mrb[0].mxu0
        %v759 = vadd.f32 %v566, %v758
        %v760 = vpop.f32.mrb[0].mxu0
        %761 = vmatprep.mubr.f32.mxu0 0.0
        %762 = vmatmul.mubr.f32.gmra.mrb[0].mxu0 %v630
        %v763 = vpop.f32.mrb[0].mxu0
        %v764 = vadd.f32 %v571, %v763
        %v765 = vpop.f32.mrb[0].mxu0
        %766 = vmatprep.mubr.f32.mxu0 0.0
        %767 = vmatmul.mubr.f32.gmra.mrb[0].mxu0 %v633
        %v768 = vpop.f32.mrb[0].mxu0
        %v769 = vadd.f32 %v576, %v768
        %v770 = vpop.f32.mrb[0].mxu0
        %771 = vmatprep.mubr.f32.mxu0 0.0
        %772 = vmatmul.mubr.f32.gmra.mrb[0].mxu0 %v636
        %v773 = vpop.f32.mrb[0].mxu0
        %v774 = vadd.f32 %v581, %v773
        %v775 = vpop.f32.mrb[0].mxu0
        %776 = vmatprep.mubr.f32.mxu0 0.0
        %777 = vmatmul.mubr.f32.gmra.mrb[0].mxu0 %v639
        %v778 = vpop.f32.mrb[0].mxu0
        %v779 = vadd.f32 %v586, %v778
        %v780 = vpop.f32.mrb[0].mxu0
        %781 = vmatprep.mubr.f32.mxu0 0.0
        %782 = vmatmul.mubr.f32.gmra.mrb[0].mxu0 %v642
        %v783 = vpop.f32.mrb[0].mxu0
        %v784 = vadd.f32 %v591, %v783
        %v785 = vpop.f32.mrb[0].mxu0
        %786 = vmatprep.mubr.f32.mxu0 0.0
        %787 = vmatmul.mubr.f32.gmra.mrb[0].mxu0 %v645
        %v788 = vpop.f32.mrb[0].mxu0
        %v789 = vadd.f32 %v596, %v788
        %v790 = vpop.f32.mrb[0].mxu0
        %791 = vdwg.mxu0
        %s792 = scalar_lea.vmem %s332, 32
        %v793 = vld [vmem:[%s792] sm:$0xff]
        %v794 = vld [vmem:[%s792 + $0x8] sm:$0xff]
        %v795 = vld [vmem:[%s792 + $0x10] sm:$0xff]
        %v796 = vld [vmem:[%s792 + $0x18] sm:$0xff]
        %v797 = vld [vmem:[%s792 + $0x20] sm:$0xff]
        %v798 = vld [vmem:[%s792 + $0x28] sm:$0xff]
        %v799 = vld [vmem:[%s792 + $0x30] sm:$0xff]
        %v800 = vld [vmem:[%s792 + $0x38] sm:$0xff]
        %v801 = vld [vmem:[%s792 + $0x40] sm:$0xff]
        %v802 = vld [vmem:[%s792 + $0x48] sm:$0xff]
        %v803 = vld [vmem:[%s792 + $0x50] sm:$0xff]
        %v804 = vld [vmem:[%s792 + $0x58] sm:$0xff]
        %v805 = vld [vmem:[%s792 + $0x60] sm:$0xff]
        %v806 = vld [vmem:[%s792 + $0x68] sm:$0xff]
        %v807 = vld [vmem:[%s792 + $0x70] sm:$0xff]
        %v808 = vld [vmem:[%s792 + $0x78] sm:$0xff]
        %v810 = vsel %vm405, %v793, 0
        %v813 = vsel %vm405, %v794, 0
        %v816 = vsel %vm405, %v795, 0
        %v819 = vsel %vm405, %v796, 0
        %v822 = vsel %vm405, %v797, 0
        %v825 = vsel %vm405, %v798, 0
        %v828 = vsel %vm405, %v799, 0
        %v831 = vsel %vm405, %v800, 0
        %v834 = vsel %vm405, %v801, 0
        %v837 = vsel %vm405, %v802, 0
        %v840 = vsel %vm405, %v803, 0
        %v843 = vsel %vm405, %v804, 0
        %v846 = vsel %vm405, %v805, 0
        %v849 = vsel %vm405, %v806, 0
        %v852 = vsel %vm405, %v807, 0
        %v855 = vsel %vm405, %v808, 0
        %857 = vmatprep.subr.mxu0 0.0
        %858 = vmatpush1.msra.mxu0 %v360
        %859 = vmatprep.subr.mxu0 0.0
        %860 = vmatpush1.msra.mxu0 %v361
        %861 = vmatprep.subr.mxu0 0.0
        %862 = vmatpush1.msra.mxu0 %v362
        %863 = vmatprep.subr.mxu0 0.0
        %864 = vmatpush1.msra.mxu0 %v363
        %865 = vmatprep.subr.mxu0 0.0
        %866 = vmatpush1.msra.mxu0 %v364
        %867 = vmatprep.subr.mxu0 0.0
        %868 = vmatpush1.msra.mxu0 %v365
        %869 = vmatprep.subr.mxu0 0.0
        %870 = vmatpush1.msra.mxu0 %v366
        %871 = vmatprep.subr.mxu0 0.0
        %872 = vmatpush1.msra.mxu0 %v367
        %873 = vmatprep.subr.mxu0 0.0
        %874 = vmatpush1.msra.mxu0 %v368
        %875 = vmatprep.subr.mxu0 0.0
        %876 = vmatpush1.msra.mxu0 %v369
        %877 = vmatprep.subr.mxu0 0.0
        %878 = vmatpush1.msra.mxu0 %v370
        %879 = vmatprep.subr.mxu0 0.0
        %880 = vmatpush1.msra.mxu0 %v371
        %881 = vmatprep.subr.mxu0 0.0
        %882 = vmatpush1.msra.mxu0 0.0
        %883 = vmatprep.subr.mxu0 0.0
        %884 = vmatpush1.msra.mxu0 0.0
        %885 = vmatprep.subr.mxu0 0.0
        %886 = vmatpush1.msra.mxu0 0.0
        %887 = vmatprep.subr.mxu0 0.0
        %888 = vmatpush1.msra.mxu0 0.0
        %889 = vmatprep.subr.mxu0 0.0
        %890 = vmatpush1.msra.mxu0 0.0
        %891 = vmatprep.subr.mxu0 0.0
        %892 = vmatpush1.msra.mxu0 0.0
        %893 = vmatprep.subr.mxu0 0.0
        %894 = vmatpush1.msra.mxu0 0.0
        %895 = vmatprep.subr.mxu0 0.0
        %896 = vmatpush1.msra.mxu0 0.0
        %897 = vmatprep.subr.mxu0 0.0
        %898 = vmatpush1.msra.mxu0 0.0
        %899 = vmatprep.subr.mxu0 0.0
        %900 = vmatpush1.msra.mxu0 0.0
        %901 = vmatprep.subr.mxu0 0.0
        %902 = vmatpush1.msra.mxu0 0.0
        %903 = vmatprep.subr.mxu0 0.0
        %904 = vmatpush1.msra.mxu0 0.0
        %905 = vmatprep.subr.mxu0 0.0
        %906 = vmatpush1.msra.mxu0 0.0
        %907 = vmatprep.subr.mxu0 0.0
        %908 = vmatpush1.msra.mxu0 0.0
        %909 = vmatprep.subr.mxu0 0.0
        %910 = vmatpush1.msra.mxu0 0.0
        %911 = vmatprep.subr.mxu0 0.0
        %912 = vmatpush1.msra.mxu0 0.0
        %913 = vmatprep.subr.mxu0 0.0
        %914 = vmatpush1.msra.mxu0 0.0
        %915 = vmatprep.subr.mxu0 0.0
        %916 = vmatpush1.msra.mxu0 0.0
        %917 = vmatprep.subr.mxu0 0.0
        %918 = vmatpush1.msra.mxu0 0.0
        %919 = vmatprep.subr.mxu0 0.0
        %920 = vmatpush1.msra.mxu0 0.0
        %921 = vmatprep.mubr.f32.mxu0 0.0
        %922 = vmatmul.mubr.f32.gmra.mrb[0].mxu0 %v810
        %v923 = vpop.f32.mrb[0].mxu0
        %v924 = vadd.f32 0.0, %v923
        %v925 = vpop.f32.mrb[0].mxu0
        %926 = vmatprep.mubr.f32.mxu0 0.0
        %927 = vmatmul.mubr.f32.gmra.mrb[0].mxu0 %v813
        %v928 = vpop.f32.mrb[0].mxu0
        %v929 = vadd.f32 0.0, %v928
        %v930 = vpop.f32.mrb[0].mxu0
        %931 = vmatprep.mubr.f32.mxu0 0.0
        %932 = vmatmul.mubr.f32.gmra.mrb[0].mxu0 %v816
        %v933 = vpop.f32.mrb[0].mxu0
        %v934 = vadd.f32 0.0, %v933
        %v935 = vpop.f32.mrb[0].mxu0
        %936 = vmatprep.mubr.f32.mxu0 0.0
        %937 = vmatmul.mubr.f32.gmra.mrb[0].mxu0 %v819
        %v938 = vpop.f32.mrb[0].mxu0
        %v939 = vadd.f32 0.0, %v938
        %v940 = vpop.f32.mrb[0].mxu0
        %941 = vmatprep.mubr.f32.mxu0 0.0
        %942 = vmatmul.mubr.f32.gmra.mrb[0].mxu0 %v822
        %v943 = vpop.f32.mrb[0].mxu0
        %v944 = vadd.f32 0.0, %v943
        %v945 = vpop.f32.mrb[0].mxu0
        %946 = vmatprep.mubr.f32.mxu0 0.0
        %947 = vmatmul.mubr.f32.gmra.mrb[0].mxu0 %v825
        %v948 = vpop.f32.mrb[0].mxu0
        %v949 = vadd.f32 0.0, %v948
        %v950 = vpop.f32.mrb[0].mxu0
        %951 = vmatprep.mubr.f32.mxu0 0.0
        %952 = vmatmul.mubr.f32.gmra.mrb[0].mxu0 %v828
        %v953 = vpop.f32.mrb[0].mxu0
        %v954 = vadd.f32 0.0, %v953
        %v955 = vpop.f32.mrb[0].mxu0
        %956 = vmatprep.mubr.f32.mxu0 0.0
        %957 = vmatmul.mubr.f32.gmra.mrb[0].mxu0 %v831
        %v958 = vpop.f32.mrb[0].mxu0
        %v959 = vadd.f32 0.0, %v958
        %v960 = vpop.f32.mrb[0].mxu0
        %961 = vmatprep.mubr.f32.mxu0 0.0
        %962 = vmatmul.mubr.f32.gmra.mrb[0].mxu0 %v834
        %v963 = vpop.f32.mrb[0].mxu0
        %v964 = vadd.f32 0.0, %v963
        %v965 = vpop.f32.mrb[0].mxu0
        %966 = vmatprep.mubr.f32.mxu0 0.0
        %967 = vmatmul.mubr.f32.gmra.mrb[0].mxu0 %v837
        %v968 = vpop.f32.mrb[0].mxu0
        %v969 = vadd.f32 0.0, %v968
        %v970 = vpop.f32.mrb[0].mxu0
        %971 = vmatprep.mubr.f32.mxu0 0.0
        %972 = vmatmul.mubr.f32.gmra.mrb[0].mxu0 %v840
        %v973 = vpop.f32.mrb[0].mxu0
        %v974 = vadd.f32 0.0, %v973
        %v975 = vpop.f32.mrb[0].mxu0
        %976 = vmatprep.mubr.f32.mxu0 0.0
        %977 = vmatmul.mubr.f32.gmra.mrb[0].mxu0 %v843
        %v978 = vpop.f32.mrb[0].mxu0
        %v979 = vadd.f32 0.0, %v978
        %v980 = vpop.f32.mrb[0].mxu0
        %981 = vmatprep.mubr.f32.mxu0 0.0
        %982 = vmatmul.mubr.f32.gmra.mrb[0].mxu0 %v846
        %v983 = vpop.f32.mrb[0].mxu0
        %v984 = vadd.f32 0.0, %v983
        %v985 = vpop.f32.mrb[0].mxu0
        %986 = vmatprep.mubr.f32.mxu0 0.0
        %987 = vmatmul.mubr.f32.gmra.mrb[0].mxu0 %v849
        %v988 = vpop.f32.mrb[0].mxu0
        %v989 = vadd.f32 0.0, %v988
        %v990 = vpop.f32.mrb[0].mxu0
        %991 = vmatprep.mubr.f32.mxu0 0.0
        %992 = vmatmul.mubr.f32.gmra.mrb[0].mxu0 %v852
        %v993 = vpop.f32.mrb[0].mxu0
        %v994 = vadd.f32 0.0, %v993
        %v995 = vpop.f32.mrb[0].mxu0
        %996 = vmatprep.mubr.f32.mxu0 0.0
        %997 = vmatmul.mubr.f32.gmra.mrb[0].mxu0 %v855
        %v998 = vpop.f32.mrb[0].mxu0
        %v999 = vadd.f32 0.0, %v998
        %v1000 = vpop.f32.mrb[0].mxu0
        %1001 = vdwg.mxu0
        %v1002 = vadd.f32 %v714, %v924
        %v1003 = vadd.f32 %v719, %v929
        %v1004 = vadd.f32 %v724, %v934
        %v1005 = vadd.f32 %v729, %v939
        %v1006 = vadd.f32 %v734, %v944
        %v1007 = vadd.f32 %v739, %v949
        %v1008 = vadd.f32 %v744, %v954
        %v1009 = vadd.f32 %v749, %v959
        %v1010 = vadd.f32 %v754, %v964
        %v1011 = vadd.f32 %v759, %v969
        %v1012 = vadd.f32 %v764, %v974
        %v1013 = vadd.f32 %v769, %v979
        %v1014 = vadd.f32 %v774, %v984
        %v1015 = vadd.f32 %v779, %v989
        %v1016 = vadd.f32 %v784, %v994
        %v1017 = vadd.f32 %v789, %v999
        %v1019 = vlaneseq
        %v1020 = vshrl.u32 %v1019, 7
        %v1021 = vsub.s32 0, %v1020
        %v1022 = vrot.slane %v333, %v1021
        %v1024 = vadd.f32 %v1002, %v1022
        %v1025 = vadd.f32 %v1003, %v1022
        %v1026 = vadd.f32 %v1004, %v1022
        %v1027 = vadd.f32 %v1005, %v1022
        %v1028 = vadd.f32 %v1006, %v1022
        %v1029 = vadd.f32 %v1007, %v1022
        %v1030 = vadd.f32 %v1008, %v1022
        %v1031 = vadd.f32 %v1009, %v1022
        %v1032 = vadd.f32 %v1010, %v1022
        %v1033 = vadd.f32 %v1011, %v1022
        %v1034 = vadd.f32 %v1012, %v1022
        %v1035 = vadd.f32 %v1013, %v1022
        %v1036 = vadd.f32 %v1014, %v1022
        %v1037 = vadd.f32 %v1015, %v1022
        %v1038 = vadd.f32 %v1016, %v1022
        %v1039 = vadd.f32 %v1017, %v1022
        %v1040 = vmax.f32 %v1024, 0.0
        %v1041 = vmax.f32 %v1025, 0.0
        %v1042 = vmax.f32 %v1026, 0.0
        %v1043 = vmax.f32 %v1027, 0.0
        %v1044 = vmax.f32 %v1028, 0.0
        %v1045 = vmax.f32 %v1029, 0.0
        %v1046 = vmax.f32 %v1030, 0.0
        %v1047 = vmax.f32 %v1031, 0.0
        %v1048 = vmax.f32 %v1032, 0.0
        %v1049 = vmax.f32 %v1033, 0.0
        %v1050 = vmax.f32 %v1034, 0.0
        %v1051 = vmax.f32 %v1035, 0.0
        %v1052 = vmax.f32 %v1036, 0.0
        %v1053 = vmax.f32 %v1037, 0.0
        %v1054 = vmax.f32 %v1038, 0.0
        %v1055 = vmax.f32 %v1039, 0.0
        %vm1056 = vcmask 523264
        %1057 = vst.msk [vmem:[#allocation2] sm:$0xff] %vm1056, %v1040
        %1058 = vst.msk [vmem:[#allocation2 + $0x8] sm:$0xff] %vm1056, %v1041
        %1059 = vst.msk [vmem:[#allocation2 + $0x10] sm:$0xff] %vm1056, %v1042
        %1060 = vst.msk [vmem:[#allocation2 + $0x18] sm:$0xff] %vm1056, %v1043
        %1061 = vst.msk [vmem:[#allocation2 + $0x20] sm:$0xff] %vm1056, %v1044
        %1062 = vst.msk [vmem:[#allocation2 + $0x28] sm:$0xff] %vm1056, %v1045
        %1063 = vst.msk [vmem:[#allocation2 + $0x30] sm:$0xff] %vm1056, %v1046
        %1064 = vst.msk [vmem:[#allocation2 + $0x38] sm:$0xff] %vm1056, %v1047
        %1065 = vst.msk [vmem:[#allocation2 + $0x40] sm:$0xff] %vm1056, %v1048
        %1066 = vst.msk [vmem:[#allocation2 + $0x48] sm:$0xff] %vm1056, %v1049
        %1067 = vst.msk [vmem:[#allocation2 + $0x50] sm:$0xff] %vm1056, %v1050
        %1068 = vst.msk [vmem:[#allocation2 + $0x58] sm:$0xff] %vm1056, %v1051
        %1069 = vst.msk [vmem:[#allocation2 + $0x60] sm:$0xff] %vm1056, %v1052
        %1070 = vst.msk [vmem:[#allocation2 + $0x68] sm:$0xff] %vm1056, %v1053
        %1071 = vst.msk [vmem:[#allocation2 + $0x70] sm:$0xff] %vm1056, %v1054
        %1072 = vst.msk [vmem:[#allocation2 + $0x78] sm:$0xff] %vm1056, %v1055
        %v1073 = vsel %vm1056, %v1040, 0.0
        %v1074 = vsel %vm1056, %v1041, 0.0
        %v1075 = vadd.f32 %v1073, %v1074
        %v1076 = vsel %vm1056, %v1042, 0.0
        %v1077 = vadd.f32 %v1075, %v1076
        %v1078 = vsel %vm1056, %v1043, 0.0
        %v1079 = vadd.f32 %v1077, %v1078
        %v1080 = vsel %vm1056, %v1044, 0.0
        %v1081 = vadd.f32 %v1079, %v1080
        %v1082 = vsel %vm1056, %v1045, 0.0
        %v1083 = vadd.f32 %v1081, %v1082
        %v1084 = vsel %vm1056, %v1046, 0.0
        %v1085 = vadd.f32 %v1083, %v1084
        %v1086 = vsel %vm1056, %v1047, 0.0
        %v1087 = vadd.f32 %v1085, %v1086
        %v1088 = vsel %vm1056, %v1048, 0.0
        %v1089 = vadd.f32 %v1087, %v1088
        %v1090 = vsel %vm1056, %v1049, 0.0
        %v1091 = vadd.f32 %v1089, %v1090
        %v1092 = vsel %vm1056, %v1050, 0.0
        %v1093 = vadd.f32 %v1091, %v1092
        %v1094 = vsel %vm1056, %v1051, 0.0
        %v1095 = vadd.f32 %v1093, %v1094
        %v1096 = vsel %vm1056, %v1052, 0.0
        %v1097 = vadd.f32 %v1095, %v1096
        %v1098 = vsel %vm1056, %v1053, 0.0
        %v1099 = vadd.f32 %v1097, %v1098
        %v1100 = vsel %vm1056, %v1054, 0.0
        %v1101 = vadd.f32 %v1099, %v1100
        %v1102 = vsel %vm1056, %v1055, 0.0
        %v1103 = vadd.f32 %v1101, %v1102
        %v1104 = vrot.slane %v1103, 4
        %v1105 = vadd.f32 %v1103, %v1104
        %v1106 = vrot.slane %v1105, 2
        %v1107 = vadd.f32 %v1105, %v1106
        %v1108 = vrot.slane %v1107, 1
        %v1109 = vadd.f32 %v1107, %v1108
        %v1110 = vadd.f32 %v1109, 0.0
        %s1111 = scalar_lea.vmem %s332, 128
        %v1112 = vld [vmem:[%s1111] sm:$0xff]
        %v1113 = vld [vmem:[%s1111 + $0x8] sm:$0xff]
        %v1114 = vld [vmem:[%s1111 + $0x10] sm:$0xff]
        %v1115 = vld [vmem:[%s1111 + $0x18] sm:$0xff]
        %v1116 = vld [vmem:[%s1111 + $0x20] sm:$0xff]
        %v1117 = vld [vmem:[%s1111 + $0x28] sm:$0xff]
        %v1118 = vld [vmem:[%s1111 + $0x30] sm:$0xff]
        %v1119 = vld [vmem:[%s1111 + $0x38] sm:$0xff]
        %v1120 = vld [vmem:[%s1111 + $0x40] sm:$0xff]
        %v1121 = vld [vmem:[%s1111 + $0x48] sm:$0xff]
        %v1122 = vld [vmem:[%s1111 + $0x50] sm:$0xff]
        %v1123 = vld [vmem:[%s1111 + $0x58] sm:$0xff]
        %v1124 = vld [vmem:[%s1111 + $0x60] sm:$0xff]
        %v1125 = vld [vmem:[%s1111 + $0x68] sm:$0xff]
        %v1126 = vld [vmem:[%s1111 + $0x70] sm:$0xff]
        %v1127 = vld [vmem:[%s1111 + $0x78] sm:$0xff]
        %s1128 = scalar_lea.vmem %s332, 144
        %v1129 = vld [vmem:[%s1128] sm:$0xff]
        %v1130 = vld [vmem:[%s1128 + $0x8] sm:$0xff]
        %v1131 = vld [vmem:[%s1128 + $0x10] sm:$0xff]
        %v1132 = vld [vmem:[%s1128 + $0x18] sm:$0xff]
        %v1133 = vld [vmem:[%s1128 + $0x20] sm:$0xff]
        %v1134 = vld [vmem:[%s1128 + $0x28] sm:$0xff]
        %v1135 = vld [vmem:[%s1128 + $0x30] sm:$0xff]
        %v1136 = vld [vmem:[%s1128 + $0x38] sm:$0xff]
        %v1137 = vld [vmem:[%s1128 + $0x40] sm:$0xff]
        %v1138 = vld [vmem:[%s1128 + $0x48] sm:$0xff]
        %v1139 = vld [vmem:[%s1128 + $0x50] sm:$0xff]
        %v1140 = vld [vmem:[%s1128 + $0x58] sm:$0xff]
        %v1141 = vld [vmem:[%s1128 + $0x60] sm:$0xff]
        %v1142 = vld [vmem:[%s1128 + $0x68] sm:$0xff]
        %v1143 = vld [vmem:[%s1128 + $0x70] sm:$0xff]
        %v1144 = vld [vmem:[%s1128 + $0x78] sm:$0xff]
        %v1146 = vsel %vm405, %v1129, 0
        %v1149 = vsel %vm405, %v1130, 0
        %v1152 = vsel %vm405, %v1131, 0
        %v1155 = vsel %vm405, %v1132, 0
        %v1158 = vsel %vm405, %v1133, 0
        %v1161 = vsel %vm405, %v1134, 0
        %v1164 = vsel %vm405, %v1135, 0
        %v1167 = vsel %vm405, %v1136, 0
        %v1170 = vsel %vm405, %v1137, 0
        %v1173 = vsel %vm405, %v1138, 0
        %v1176 = vsel %vm405, %v1139, 0
        %v1179 = vsel %vm405, %v1140, 0
        %v1182 = vsel %vm405, %v1141, 0
        %v1185 = vsel %vm405, %v1142, 0
        %v1188 = vsel %vm405, %v1143, 0
        %v1191 = vsel %vm405, %v1144, 0
        %1193 = vmatprep.subr.mxu0 0.0
        %1194 = vmatpush1.msra.mxu0 %v347
        %1195 = vmatprep.subr.mxu0 0.0
        %1196 = vmatpush1.msra.mxu0 %v348
        %1197 = vmatprep.subr.mxu0 0.0
        %1198 = vmatpush1.msra.mxu0 %v349
        %1199 = vmatprep.subr.mxu0 0.0
        %1200 = vmatpush1.msra.mxu0 %v350
        %1201 = vmatprep.subr.mxu0 0.0
        %1202 = vmatpush1.msra.mxu0 %v351
        %1203 = vmatprep.subr.mxu0 0.0
        %1204 = vmatpush1.msra.mxu0 %v352
        %1205 = vmatprep.subr.mxu0 0.0
        %1206 = vmatpush1.msra.mxu0 %v353
        %1207 = vmatprep.subr.mxu0 0.0
        %1208 = vmatpush1.msra.mxu0 %v354
        %1209 = vmatprep.subr.mxu0 0.0
        %1210 = vmatpush1.msra.mxu0 %v355
        %1211 = vmatprep.subr.mxu0 0.0
        %1212 = vmatpush1.msra.mxu0 %v356
        %1213 = vmatprep.subr.mxu0 0.0
        %1214 = vmatpush1.msra.mxu0 %v357
        %1215 = vmatprep.subr.mxu0 0.0
        %1216 = vmatpush1.msra.mxu0 %v358
        %1217 = vmatprep.subr.mxu0 0.0
        %1218 = vmatpush1.msra.mxu0 0.0
        %1219 = vmatprep.subr.mxu0 0.0
        %1220 = vmatpush1.msra.mxu0 0.0
        %1221 = vmatprep.subr.mxu0 0.0
        %1222 = vmatpush1.msra.mxu0 0.0
        %1223 = vmatprep.subr.mxu0 0.0
        %1224 = vmatpush1.msra.mxu0 0.0
        %1225 = vmatprep.subr.mxu0 0.0
        %1226 = vmatpush1.msra.mxu0 0.0
        %1227 = vmatprep.subr.mxu0 0.0
        %1228 = vmatpush1.msra.mxu0 0.0
        %1229 = vmatprep.subr.mxu0 0.0
        %1230 = vmatpush1.msra.mxu0 0.0
        %1231 = vmatprep.subr.mxu0 0.0
        %1232 = vmatpush1.msra.mxu0 0.0
        %1233 = vmatprep.subr.mxu0 0.0
        %1234 = vmatpush1.msra.mxu0 0.0
        %1235 = vmatprep.subr.mxu0 0.0
        %1236 = vmatpush1.msra.mxu0 0.0
        %1237 = vmatprep.subr.mxu0 0.0
        %1238 = vmatpush1.msra.mxu0 0.0
        %1239 = vmatprep.subr.mxu0 0.0
        %1240 = vmatpush1.msra.mxu0 0.0
        %1241 = vmatprep.subr.mxu0 0.0
        %1242 = vmatpush1.msra.mxu0 0.0
        %1243 = vmatprep.subr.mxu0 0.0
        %1244 = vmatpush1.msra.mxu0 0.0
        %1245 = vmatprep.subr.mxu0 0.0
        %1246 = vmatpush1.msra.mxu0 0.0
        %1247 = vmatprep.subr.mxu0 0.0
        %1248 = vmatpush1.msra.mxu0 0.0
        %1249 = vmatprep.subr.mxu0 0.0
        %1250 = vmatpush1.msra.mxu0 0.0
        %1251 = vmatprep.subr.mxu0 0.0
        %1252 = vmatpush1.msra.mxu0 0.0
        %1253 = vmatprep.subr.mxu0 0.0
        %1254 = vmatpush1.msra.mxu0 0.0
        %1255 = vmatprep.subr.mxu0 0.0
        %1256 = vmatpush1.msra.mxu0 0.0
        %1257 = vmatprep.mubr.f32.mxu0 0.0
        %1258 = vmatmul.mubr.f32.gmra.mrb[0].mxu0 %v1146
        %v1259 = vpop.f32.mrb[0].mxu0
        %v1260 = vadd.f32 0.0, %v1259
        %v1261 = vpop.f32.mrb[0].mxu0
        %1262 = vmatprep.mubr.f32.mxu0 0.0
        %1263 = vmatmul.mubr.f32.gmra.mrb[0].mxu0 %v1149
        %v1264 = vpop.f32.mrb[0].mxu0
        %v1265 = vadd.f32 0.0, %v1264
        %v1266 = vpop.f32.mrb[0].mxu0
        %1267 = vmatprep.mubr.f32.mxu0 0.0
        %1268 = vmatmul.mubr.f32.gmra.mrb[0].mxu0 %v1152
        %v1269 = vpop.f32.mrb[0].mxu0
        %v1270 = vadd.f32 0.0, %v1269
        %v1271 = vpop.f32.mrb[0].mxu0
        %1272 = vmatprep.mubr.f32.mxu0 0.0
        %1273 = vmatmul.mubr.f32.gmra.mrb[0].mxu0 %v1155
        %v1274 = vpop.f32.mrb[0].mxu0
        %v1275 = vadd.f32 0.0, %v1274
        %v1276 = vpop.f32.mrb[0].mxu0
        %1277 = vmatprep.mubr.f32.mxu0 0.0
        %1278 = vmatmul.mubr.f32.gmra.mrb[0].mxu0 %v1158
        %v1279 = vpop.f32.mrb[0].mxu0
        %v1280 = vadd.f32 0.0, %v1279
        %v1281 = vpop.f32.mrb[0].mxu0
        %1282 = vmatprep.mubr.f32.mxu0 0.0
        %1283 = vmatmul.mubr.f32.gmra.mrb[0].mxu0 %v1161
        %v1284 = vpop.f32.mrb[0].mxu0
        %v1285 = vadd.f32 0.0, %v1284
        %v1286 = vpop.f32.mrb[0].mxu0
        %1287 = vmatprep.mubr.f32.mxu0 0.0
        %1288 = vmatmul.mubr.f32.gmra.mrb[0].mxu0 %v1164
        %v1289 = vpop.f32.mrb[0].mxu0
        %v1290 = vadd.f32 0.0, %v1289
        %v1291 = vpop.f32.mrb[0].mxu0
        %1292 = vmatprep.mubr.f32.mxu0 0.0
        %1293 = vmatmul.mubr.f32.gmra.mrb[0].mxu0 %v1167
        %v1294 = vpop.f32.mrb[0].mxu0
        %v1295 = vadd.f32 0.0, %v1294
        %v1296 = vpop.f32.mrb[0].mxu0
        %1297 = vmatprep.mubr.f32.mxu0 0.0
        %1298 = vmatmul.mubr.f32.gmra.mrb[0].mxu0 %v1170
        %v1299 = vpop.f32.mrb[0].mxu0
        %v1300 = vadd.f32 0.0, %v1299
        %v1301 = vpop.f32.mrb[0].mxu0
        %1302 = vmatprep.mubr.f32.mxu0 0.0
        %1303 = vmatmul.mubr.f32.gmra.mrb[0].mxu0 %v1173
        %v1304 = vpop.f32.mrb[0].mxu0
        %v1305 = vadd.f32 0.0, %v1304
        %v1306 = vpop.f32.mrb[0].mxu0
        %1307 = vmatprep.mubr.f32.mxu0 0.0
        %1308 = vmatmul.mubr.f32.gmra.mrb[0].mxu0 %v1176
        %v1309 = vpop.f32.mrb[0].mxu0
        %v1310 = vadd.f32 0.0, %v1309
        %v1311 = vpop.f32.mrb[0].mxu0
        %1312 = vmatprep.mubr.f32.mxu0 0.0
        %1313 = vmatmul.mubr.f32.gmra.mrb[0].mxu0 %v1179
        %v1314 = vpop.f32.mrb[0].mxu0
        %v1315 = vadd.f32 0.0, %v1314
        %v1316 = vpop.f32.mrb[0].mxu0
        %1317 = vmatprep.mubr.f32.mxu0 0.0
        %1318 = vmatmul.mubr.f32.gmra.mrb[0].mxu0 %v1182
        %v1319 = vpop.f32.mrb[0].mxu0
        %v1320 = vadd.f32 0.0, %v1319
        %v1321 = vpop.f32.mrb[0].mxu0
        %1322 = vmatprep.mubr.f32.mxu0 0.0
        %1323 = vmatmul.mubr.f32.gmra.mrb[0].mxu0 %v1185
        %v1324 = vpop.f32.mrb[0].mxu0
        %v1325 = vadd.f32 0.0, %v1324
        %v1326 = vpop.f32.mrb[0].mxu0
        %1327 = vmatprep.mubr.f32.mxu0 0.0
        %1328 = vmatmul.mubr.f32.gmra.mrb[0].mxu0 %v1188
        %v1329 = vpop.f32.mrb[0].mxu0
        %v1330 = vadd.f32 0.0, %v1329
        %v1331 = vpop.f32.mrb[0].mxu0
        %1332 = vmatprep.mubr.f32.mxu0 0.0
        %1333 = vmatmul.mubr.f32.gmra.mrb[0].mxu0 %v1191
        %v1334 = vpop.f32.mrb[0].mxu0
        %v1335 = vadd.f32 0.0, %v1334
        %v1336 = vpop.f32.mrb[0].mxu0
        %1337 = vdwg.mxu0
        %v1339 = vsel %vm405, %v1112, 0
        %v1342 = vsel %vm405, %v1113, 0
        %v1345 = vsel %vm405, %v1114, 0
        %v1348 = vsel %vm405, %v1115, 0
        %v1351 = vsel %vm405, %v1116, 0
        %v1354 = vsel %vm405, %v1117, 0
        %v1357 = vsel %vm405, %v1118, 0
        %v1360 = vsel %vm405, %v1119, 0
        %v1363 = vsel %vm405, %v1120, 0
        %v1366 = vsel %vm405, %v1121, 0
        %v1369 = vsel %vm405, %v1122, 0
        %v1372 = vsel %vm405, %v1123, 0
        %v1375 = vsel %vm405, %v1124, 0
        %v1378 = vsel %vm405, %v1125, 0
        %v1381 = vsel %vm405, %v1126, 0
        %v1384 = vsel %vm405, %v1127, 0
        %1386 = vmatprep.subr.mxu0 0.0
        %1387 = vmatpush1.msra.mxu0 %v334
        %1388 = vmatprep.subr.mxu0 0.0
        %1389 = vmatpush1.msra.mxu0 %v335
        %1390 = vmatprep.subr.mxu0 0.0
        %1391 = vmatpush1.msra.mxu0 %v336
        %1392 = vmatprep.subr.mxu0 0.0
        %1393 = vmatpush1.msra.mxu0 %v337
        %1394 = vmatprep.subr.mxu0 0.0
        %1395 = vmatpush1.msra.mxu0 %v338
        %1396 = vmatprep.subr.mxu0 0.0
        %1397 = vmatpush1.msra.mxu0 %v339
        %1398 = vmatprep.subr.mxu0 0.0
        %1399 = vmatpush1.msra.mxu0 %v340
        %1400 = vmatprep.subr.mxu0 0.0
        %1401 = vmatpush1.msra.mxu0 %v341
        %1402 = vmatprep.subr.mxu0 0.0
        %1403 = vmatpush1.msra.mxu0 %v342
        %1404 = vmatprep.subr.mxu0 0.0
        %1405 = vmatpush1.msra.mxu0 %v343
        %1406 = vmatprep.subr.mxu0 0.0
        %1407 = vmatpush1.msra.mxu0 %v344
        %1408 = vmatprep.subr.mxu0 0.0
        %1409 = vmatpush1.msra.mxu0 %v345
        %1410 = vmatprep.subr.mxu0 0.0
        %1411 = vmatpush1.msra.mxu0 0.0
        %1412 = vmatprep.subr.mxu0 0.0
        %1413 = vmatpush1.msra.mxu0 0.0
        %1414 = vmatprep.subr.mxu0 0.0
        %1415 = vmatpush1.msra.mxu0 0.0
        %1416 = vmatprep.subr.mxu0 0.0
        %1417 = vmatpush1.msra.mxu0 0.0
        %1418 = vmatprep.subr.mxu0 0.0
        %1419 = vmatpush1.msra.mxu0 0.0
        %1420 = vmatprep.subr.mxu0 0.0
        %1421 = vmatpush1.msra.mxu0 0.0
        %1422 = vmatprep.subr.mxu0 0.0
        %1423 = vmatpush1.msra.mxu0 0.0
        %1424 = vmatprep.subr.mxu0 0.0
        %1425 = vmatpush1.msra.mxu0 0.0
        %1426 = vmatprep.subr.mxu0 0.0
        %1427 = vmatpush1.msra.mxu0 0.0
        %1428 = vmatprep.subr.mxu0 0.0
        %1429 = vmatpush1.msra.mxu0 0.0
        %1430 = vmatprep.subr.mxu0 0.0
        %1431 = vmatpush1.msra.mxu0 0.0
        %1432 = vmatprep.subr.mxu0 0.0
        %1433 = vmatpush1.msra.mxu0 0.0
        %1434 = vmatprep.subr.mxu0 0.0
        %1435 = vmatpush1.msra.mxu0 0.0
        %1436 = vmatprep.subr.mxu0 0.0
        %1437 = vmatpush1.msra.mxu0 0.0
        %1438 = vmatprep.subr.mxu0 0.0
        %1439 = vmatpush1.msra.mxu0 0.0
        %1440 = vmatprep.subr.mxu0 0.0
        %1441 = vmatpush1.msra.mxu0 0.0
        %1442 = vmatprep.subr.mxu0 0.0
        %1443 = vmatpush1.msra.mxu0 0.0
        %1444 = vmatprep.subr.mxu0 0.0
        %1445 = vmatpush1.msra.mxu0 0.0
        %1446 = vmatprep.subr.mxu0 0.0
        %1447 = vmatpush1.msra.mxu0 0.0
        %1448 = vmatprep.subr.mxu0 0.0
        %1449 = vmatpush1.msra.mxu0 0.0
        %1450 = vmatprep.mubr.f32.mxu0 0.0
        %1451 = vmatmul.mubr.f32.gmra.mrb[0].mxu0 %v1339
        %v1452 = vpop.f32.mrb[0].mxu0
        %v1453 = vadd.f32 %v1260, %v1452
        %v1454 = vpop.f32.mrb[0].mxu0
        %1455 = vmatprep.mubr.f32.mxu0 0.0
        %1456 = vmatmul.mubr.f32.gmra.mrb[0].mxu0 %v1342
        %v1457 = vpop.f32.mrb[0].mxu0
        %v1458 = vadd.f32 %v1265, %v1457
        %v1459 = vpop.f32.mrb[0].mxu0
        %1460 = vmatprep.mubr.f32.mxu0 0.0
        %1461 = vmatmul.mubr.f32.gmra.mrb[0].mxu0 %v1345
        %v1462 = vpop.f32.mrb[0].mxu0
        %v1463 = vadd.f32 %v1270, %v1462
        %v1464 = vpop.f32.mrb[0].mxu0
        %1465 = vmatprep.mubr.f32.mxu0 0.0
        %1466 = vmatmul.mubr.f32.gmra.mrb[0].mxu0 %v1348
        %v1467 = vpop.f32.mrb[0].mxu0
        %v1468 = vadd.f32 %v1275, %v1467
        %v1469 = vpop.f32.mrb[0].mxu0
        %1470 = vmatprep.mubr.f32.mxu0 0.0
        %1471 = vmatmul.mubr.f32.gmra.mrb[0].mxu0 %v1351
        %v1472 = vpop.f32.mrb[0].mxu0
        %v1473 = vadd.f32 %v1280, %v1472
        %v1474 = vpop.f32.mrb[0].mxu0
        %1475 = vmatprep.mubr.f32.mxu0 0.0
        %1476 = vmatmul.mubr.f32.gmra.mrb[0].mxu0 %v1354
        %v1477 = vpop.f32.mrb[0].mxu0
        %v1478 = vadd.f32 %v1285, %v1477
        %v1479 = vpop.f32.mrb[0].mxu0
        %1480 = vmatprep.mubr.f32.mxu0 0.0
        %1481 = vmatmul.mubr.f32.gmra.mrb[0].mxu0 %v1357
        %v1482 = vpop.f32.mrb[0].mxu0
        %v1483 = vadd.f32 %v1290, %v1482
        %v1484 = vpop.f32.mrb[0].mxu0
        %1485 = vmatprep.mubr.f32.mxu0 0.0
        %1486 = vmatmul.mubr.f32.gmra.mrb[0].mxu0 %v1360
        %v1487 = vpop.f32.mrb[0].mxu0
        %v1488 = vadd.f32 %v1295, %v1487
        %v1489 = vpop.f32.mrb[0].mxu0
        %1490 = vmatprep.mubr.f32.mxu0 0.0
        %1491 = vmatmul.mubr.f32.gmra.mrb[0].mxu0 %v1363
        %v1492 = vpop.f32.mrb[0].mxu0
        %v1493 = vadd.f32 %v1300, %v1492
        %v1494 = vpop.f32.mrb[0].mxu0
        %1495 = vmatprep.mubr.f32.mxu0 0.0
        %1496 = vmatmul.mubr.f32.gmra.mrb[0].mxu0 %v1366
        %v1497 = vpop.f32.mrb[0].mxu0
        %v1498 = vadd.f32 %v1305, %v1497
        %v1499 = vpop.f32.mrb[0].mxu0
        %1500 = vmatprep.mubr.f32.mxu0 0.0
        %1501 = vmatmul.mubr.f32.gmra.mrb[0].mxu0 %v1369
        %v1502 = vpop.f32.mrb[0].mxu0
        %v1503 = vadd.f32 %v1310, %v1502
        %v1504 = vpop.f32.mrb[0].mxu0
        %1505 = vmatprep.mubr.f32.mxu0 0.0
        %1506 = vmatmul.mubr.f32.gmra.mrb[0].mxu0 %v1372
        %v1507 = vpop.f32.mrb[0].mxu0
        %v1508 = vadd.f32 %v1315, %v1507
        %v1509 = vpop.f32.mrb[0].mxu0
        %1510 = vmatprep.mubr.f32.mxu0 0.0
        %1511 = vmatmul.mubr.f32.gmra.mrb[0].mxu0 %v1375
        %v1512 = vpop.f32.mrb[0].mxu0
        %v1513 = vadd.f32 %v1320, %v1512
        %v1514 = vpop.f32.mrb[0].mxu0
        %1515 = vmatprep.mubr.f32.mxu0 0.0
        %1516 = vmatmul.mubr.f32.gmra.mrb[0].mxu0 %v1378
        %v1517 = vpop.f32.mrb[0].mxu0
        %v1518 = vadd.f32 %v1325, %v1517
        %v1519 = vpop.f32.mrb[0].mxu0
        %1520 = vmatprep.mubr.f32.mxu0 0.0
        %1521 = vmatmul.mubr.f32.gmra.mrb[0].mxu0 %v1381
        %v1522 = vpop.f32.mrb[0].mxu0
        %v1523 = vadd.f32 %v1330, %v1522
        %v1524 = vpop.f32.mrb[0].mxu0
        %1525 = vmatprep.mubr.f32.mxu0 0.0
        %1526 = vmatmul.mubr.f32.gmra.mrb[0].mxu0 %v1384
        %v1527 = vpop.f32.mrb[0].mxu0
        %v1528 = vadd.f32 %v1335, %v1527
        %v1529 = vpop.f32.mrb[0].mxu0
        %1530 = vdwg.mxu0
        %s1531 = scalar_lea.vmem %s332, 160
        %v1532 = vld [vmem:[%s1531] sm:$0xff]
        %v1533 = vld [vmem:[%s1531 + $0x8] sm:$0xff]
        %v1534 = vld [vmem:[%s1531 + $0x10] sm:$0xff]
        %v1535 = vld [vmem:[%s1531 + $0x18] sm:$0xff]
        %v1536 = vld [vmem:[%s1531 + $0x20] sm:$0xff]
        %v1537 = vld [vmem:[%s1531 + $0x28] sm:$0xff]
        %v1538 = vld [vmem:[%s1531 + $0x30] sm:$0xff]
        %v1539 = vld [vmem:[%s1531 + $0x38] sm:$0xff]
        %v1540 = vld [vmem:[%s1531 + $0x40] sm:$0xff]
        %v1541 = vld [vmem:[%s1531 + $0x48] sm:$0xff]
        %v1542 = vld [vmem:[%s1531 + $0x50] sm:$0xff]
        %v1543 = vld [vmem:[%s1531 + $0x58] sm:$0xff]
        %v1544 = vld [vmem:[%s1531 + $0x60] sm:$0xff]
        %v1545 = vld [vmem:[%s1531 + $0x68] sm:$0xff]
        %v1546 = vld [vmem:[%s1531 + $0x70] sm:$0xff]
        %v1547 = vld [vmem:[%s1531 + $0x78] sm:$0xff]
        %v1549 = vsel %vm405, %v1532, 0
        %v1552 = vsel %vm405, %v1533, 0
        %v1555 = vsel %vm405, %v1534, 0
        %v1558 = vsel %vm405, %v1535, 0
        %v1561 = vsel %vm405, %v1536, 0
        %v1564 = vsel %vm405, %v1537, 0
        %v1567 = vsel %vm405, %v1538, 0
        %v1570 = vsel %vm405, %v1539, 0
        %v1573 = vsel %vm405, %v1540, 0
        %v1576 = vsel %vm405, %v1541, 0
        %v1579 = vsel %vm405, %v1542, 0
        %v1582 = vsel %vm405, %v1543, 0
        %v1585 = vsel %vm405, %v1544, 0
        %v1588 = vsel %vm405, %v1545, 0
        %v1591 = vsel %vm405, %v1546, 0
        %v1594 = vsel %vm405, %v1547, 0
        %1596 = vmatprep.subr.mxu0 0.0
        %1597 = vmatpush1.msra.mxu0 %v360
        %1598 = vmatprep.subr.mxu0 0.0
        %1599 = vmatpush1.msra.mxu0 %v361
        %1600 = vmatprep.subr.mxu0 0.0
        %1601 = vmatpush1.msra.mxu0 %v362
        %1602 = vmatprep.subr.mxu0 0.0
        %1603 = vmatpush1.msra.mxu0 %v363
        %1604 = vmatprep.subr.mxu0 0.0
        %1605 = vmatpush1.msra.mxu0 %v364
        %1606 = vmatprep.subr.mxu0 0.0
        %1607 = vmatpush1.msra.mxu0 %v365
        %1608 = vmatprep.subr.mxu0 0.0
        %1609 = vmatpush1.msra.mxu0 %v366
        %1610 = vmatprep.subr.mxu0 0.0
        %1611 = vmatpush1.msra.mxu0 %v367
        %1612 = vmatprep.subr.mxu0 0.0
        %1613 = vmatpush1.msra.mxu0 %v368
        %1614 = vmatprep.subr.mxu0 0.0
        %1615 = vmatpush1.msra.mxu0 %v369
        %1616 = vmatprep.subr.mxu0 0.0
        %1617 = vmatpush1.msra.mxu0 %v370
        %1618 = vmatprep.subr.mxu0 0.0
        %1619 = vmatpush1.msra.mxu0 %v371
        %1620 = vmatprep.subr.mxu0 0.0
        %1621 = vmatpush1.msra.mxu0 0.0
        %1622 = vmatprep.subr.mxu0 0.0
        %1623 = vmatpush1.msra.mxu0 0.0
        %1624 = vmatprep.subr.mxu0 0.0
        %1625 = vmatpush1.msra.mxu0 0.0
        %1626 = vmatprep.subr.mxu0 0.0
        %1627 = vmatpush1.msra.mxu0 0.0
        %1628 = vmatprep.subr.mxu0 0.0
        %1629 = vmatpush1.msra.mxu0 0.0
        %1630 = vmatprep.subr.mxu0 0.0
        %1631 = vmatpush1.msra.mxu0 0.0
        %1632 = vmatprep.subr.mxu0 0.0
        %1633 = vmatpush1.msra.mxu0 0.0
        %1634 = vmatprep.subr.mxu0 0.0
        %1635 = vmatpush1.msra.mxu0 0.0
        %1636 = vmatprep.subr.mxu0 0.0
        %1637 = vmatpush1.msra.mxu0 0.0
        %1638 = vmatprep.subr.mxu0 0.0
        %1639 = vmatpush1.msra.mxu0 0.0
        %1640 = vmatprep.subr.mxu0 0.0
        %1641 = vmatpush1.msra.mxu0 0.0
        %1642 = vmatprep.subr.mxu0 0.0
        %1643 = vmatpush1.msra.mxu0 0.0
        %1644 = vmatprep.subr.mxu0 0.0
        %1645 = vmatpush1.msra.mxu0 0.0
        %1646 = vmatprep.subr.mxu0 0.0
        %1647 = vmatpush1.msra.mxu0 0.0
        %1648 = vmatprep.subr.mxu0 0.0
        %1649 = vmatpush1.msra.mxu0 0.0
        %1650 = vmatprep.subr.mxu0 0.0
        %1651 = vmatpush1.msra.mxu0 0.0
        %1652 = vmatprep.subr.mxu0 0.0
        %1653 = vmatpush1.msra.mxu0 0.0
        %1654 = vmatprep.subr.mxu0 0.0
        %1655 = vmatpush1.msra.mxu0 0.0
        %1656 = vmatprep.subr.mxu0 0.0
        %1657 = vmatpush1.msra.mxu0 0.0
        %1658 = vmatprep.subr.mxu0 0.0
        %1659 = vmatpush1.msra.mxu0 0.0
        %1660 = vmatprep.mubr.f32.mxu0 0.0
        %1661 = vmatmul.mubr.f32.gmra.mrb[0].mxu0 %v1549
        %v1662 = vpop.f32.mrb[0].mxu0
        %v1663 = vadd.f32 0.0, %v1662
        %v1664 = vpop.f32.mrb[0].mxu0
        %1665 = vmatprep.mubr.f32.mxu0 0.0
        %1666 = vmatmul.mubr.f32.gmra.mrb[0].mxu0 %v1552
        %v1667 = vpop.f32.mrb[0].mxu0
        %v1668 = vadd.f32 0.0, %v1667
        %v1669 = vpop.f32.mrb[0].mxu0
        %1670 = vmatprep.mubr.f32.mxu0 0.0
        %1671 = vmatmul.mubr.f32.gmra.mrb[0].mxu0 %v1555
        %v1672 = vpop.f32.mrb[0].mxu0
        %v1673 = vadd.f32 0.0, %v1672
        %v1674 = vpop.f32.mrb[0].mxu0
        %1675 = vmatprep.mubr.f32.mxu0 0.0
        %1676 = vmatmul.mubr.f32.gmra.mrb[0].mxu0 %v1558
        %v1677 = vpop.f32.mrb[0].mxu0
        %v1678 = vadd.f32 0.0, %v1677
        %v1679 = vpop.f32.mrb[0].mxu0
        %1680 = vmatprep.mubr.f32.mxu0 0.0
        %1681 = vmatmul.mubr.f32.gmra.mrb[0].mxu0 %v1561
        %v1682 = vpop.f32.mrb[0].mxu0
        %v1683 = vadd.f32 0.0, %v1682
        %v1684 = vpop.f32.mrb[0].mxu0
        %1685 = vmatprep.mubr.f32.mxu0 0.0
        %1686 = vmatmul.mubr.f32.gmra.mrb[0].mxu0 %v1564
        %v1687 = vpop.f32.mrb[0].mxu0
        %v1688 = vadd.f32 0.0, %v1687
        %v1689 = vpop.f32.mrb[0].mxu0
        %1690 = vmatprep.mubr.f32.mxu0 0.0
        %1691 = vmatmul.mubr.f32.gmra.mrb[0].mxu0 %v1567
        %v1692 = vpop.f32.mrb[0].mxu0
        %v1693 = vadd.f32 0.0, %v1692
        %v1694 = vpop.f32.mrb[0].mxu0
        %1695 = vmatprep.mubr.f32.mxu0 0.0
        %1696 = vmatmul.mubr.f32.gmra.mrb[0].mxu0 %v1570
        %v1697 = vpop.f32.mrb[0].mxu0
        %v1698 = vadd.f32 0.0, %v1697
        %v1699 = vpop.f32.mrb[0].mxu0
        %1700 = vmatprep.mubr.f32.mxu0 0.0
        %1701 = vmatmul.mubr.f32.gmra.mrb[0].mxu0 %v1573
        %v1702 = vpop.f32.mrb[0].mxu0
        %v1703 = vadd.f32 0.0, %v1702
        %v1704 = vpop.f32.mrb[0].mxu0
        %1705 = vmatprep.mubr.f32.mxu0 0.0
        %1706 = vmatmul.mubr.f32.gmra.mrb[0].mxu0 %v1576
        %v1707 = vpop.f32.mrb[0].mxu0
        %v1708 = vadd.f32 0.0, %v1707
        %v1709 = vpop.f32.mrb[0].mxu0
        %1710 = vmatprep.mubr.f32.mxu0 0.0
        %1711 = vmatmul.mubr.f32.gmra.mrb[0].mxu0 %v1579
        %v1712 = vpop.f32.mrb[0].mxu0
        %v1713 = vadd.f32 0.0, %v1712
        %v1714 = vpop.f32.mrb[0].mxu0
        %1715 = vmatprep.mubr.f32.mxu0 0.0
        %1716 = vmatmul.mubr.f32.gmra.mrb[0].mxu0 %v1582
        %v1717 = vpop.f32.mrb[0].mxu0
        %v1718 = vadd.f32 0.0, %v1717
        %v1719 = vpop.f32.mrb[0].mxu0
        %1720 = vmatprep.mubr.f32.mxu0 0.0
        %1721 = vmatmul.mubr.f32.gmra.mrb[0].mxu0 %v1585
        %v1722 = vpop.f32.mrb[0].mxu0
        %v1723 = vadd.f32 0.0, %v1722
        %v1724 = vpop.f32.mrb[0].mxu0
        %1725 = vmatprep.mubr.f32.mxu0 0.0
        %1726 = vmatmul.mubr.f32.gmra.mrb[0].mxu0 %v1588
        %v1727 = vpop.f32.mrb[0].mxu0
        %v1728 = vadd.f32 0.0, %v1727
        %v1729 = vpop.f32.mrb[0].mxu0
        %1730 = vmatprep.mubr.f32.mxu0 0.0
        %1731 = vmatmul.mubr.f32.gmra.mrb[0].mxu0 %v1591
        %v1732 = vpop.f32.mrb[0].mxu0
        %v1733 = vadd.f32 0.0, %v1732
        %v1734 = vpop.f32.mrb[0].mxu0
        %1735 = vmatprep.mubr.f32.mxu0 0.0
        %1736 = vmatmul.mubr.f32.gmra.mrb[0].mxu0 %v1594
        %v1737 = vpop.f32.mrb[0].mxu0
        %v1738 = vadd.f32 0.0, %v1737
        %v1739 = vpop.f32.mrb[0].mxu0
        %1740 = vdwg.mxu0
        %v1741 = vadd.f32 %v1453, %v1663
        %v1742 = vadd.f32 %v1458, %v1668
        %v1743 = vadd.f32 %v1463, %v1673
        %v1744 = vadd.f32 %v1468, %v1678
        %v1745 = vadd.f32 %v1473, %v1683
        %v1746 = vadd.f32 %v1478, %v1688
        %v1747 = vadd.f32 %v1483, %v1693
        %v1748 = vadd.f32 %v1488, %v1698
        %v1749 = vadd.f32 %v1493, %v1703
        %v1750 = vadd.f32 %v1498, %v1708
        %v1751 = vadd.f32 %v1503, %v1713
        %v1752 = vadd.f32 %v1508, %v1718
        %v1753 = vadd.f32 %v1513, %v1723
        %v1754 = vadd.f32 %v1518, %v1728
        %v1755 = vadd.f32 %v1523, %v1733
        %v1756 = vadd.f32 %v1528, %v1738
        %v1757 = vadd.f32 %v1741, %v1022
        %v1758 = vadd.f32 %v1742, %v1022
        %v1759 = vadd.f32 %v1743, %v1022
        %v1760 = vadd.f32 %v1744, %v1022
        %v1761 = vadd.f32 %v1745, %v1022
        %v1762 = vadd.f32 %v1746, %v1022
        %v1763 = vadd.f32 %v1747, %v1022
        %v1764 = vadd.f32 %v1748, %v1022
        %v1765 = vadd.f32 %v1749, %v1022
        %v1766 = vadd.f32 %v1750, %v1022
        %v1767 = vadd.f32 %v1751, %v1022
        %v1768 = vadd.f32 %v1752, %v1022
        %v1769 = vadd.f32 %v1753, %v1022
        %v1770 = vadd.f32 %v1754, %v1022
        %v1771 = vadd.f32 %v1755, %v1022
        %v1772 = vadd.f32 %v1756, %v1022
        %v1773 = vmax.f32 %v1757, 0.0
        %v1774 = vmax.f32 %v1758, 0.0
        %v1775 = vmax.f32 %v1759, 0.0
        %v1776 = vmax.f32 %v1760, 0.0
        %v1777 = vmax.f32 %v1761, 0.0
        %v1778 = vmax.f32 %v1762, 0.0
        %v1779 = vmax.f32 %v1763, 0.0
        %v1780 = vmax.f32 %v1764, 0.0
        %v1781 = vmax.f32 %v1765, 0.0
        %v1782 = vmax.f32 %v1766, 0.0
        %v1783 = vmax.f32 %v1767, 0.0
        %v1784 = vmax.f32 %v1768, 0.0
        %v1785 = vmax.f32 %v1769, 0.0
        %v1786 = vmax.f32 %v1770, 0.0
        %v1787 = vmax.f32 %v1771, 0.0
        %v1788 = vmax.f32 %v1772, 0.0
        %s1789 = scalar_lea.vmem [#allocation2], 128
        %1790 = vst.msk [vmem:[%s1789] sm:$0xff] %vm1056, %v1773
        %1791 = vst.msk [vmem:[%s1789 + $0x8] sm:$0xff] %vm1056, %v1774
        %1792 = vst.msk [vmem:[%s1789 + $0x10] sm:$0xff] %vm1056, %v1775
        %1793 = vst.msk [vmem:[%s1789 + $0x18] sm:$0xff] %vm1056, %v1776
        %1794 = vst.msk [vmem:[%s1789 + $0x20] sm:$0xff] %vm1056, %v1777
        %1795 = vst.msk [vmem:[%s1789 + $0x28] sm:$0xff] %vm1056, %v1778
        %1796 = vst.msk [vmem:[%s1789 + $0x30] sm:$0xff] %vm1056, %v1779
        %1797 = vst.msk [vmem:[%s1789 + $0x38] sm:$0xff] %vm1056, %v1780
        %1798 = vst.msk [vmem:[%s1789 + $0x40] sm:$0xff] %vm1056, %v1781
        %1799 = vst.msk [vmem:[%s1789 + $0x48] sm:$0xff] %vm1056, %v1782
        %1800 = vst.msk [vmem:[%s1789 + $0x50] sm:$0xff] %vm1056, %v1783
        %1801 = vst.msk [vmem:[%s1789 + $0x58] sm:$0xff] %vm1056, %v1784
        %1802 = vst.msk [vmem:[%s1789 + $0x60] sm:$0xff] %vm1056, %v1785
        %1803 = vst.msk [vmem:[%s1789 + $0x68] sm:$0xff] %vm1056, %v1786
        %1804 = vst.msk [vmem:[%s1789 + $0x70] sm:$0xff] %vm1056, %v1787
        %1805 = vst.msk [vmem:[%s1789 + $0x78] sm:$0xff] %vm1056, %v1788
        %v1806 = vsel %vm1056, %v1773, 0.0
        %v1807 = vsel %vm1056, %v1774, 0.0
        %v1808 = vadd.f32 %v1806, %v1807
        %v1809 = vsel %vm1056, %v1775, 0.0
        %v1810 = vadd.f32 %v1808, %v1809
        %v1811 = vsel %vm1056, %v1776, 0.0
        %v1812 = vadd.f32 %v1810, %v1811
        %v1813 = vsel %vm1056, %v1777, 0.0
        %v1814 = vadd.f32 %v1812, %v1813
        %v1815 = vsel %vm1056, %v1778, 0.0
        %v1816 = vadd.f32 %v1814, %v1815
        %v1817 = vsel %vm1056, %v1779, 0.0
        %v1818 = vadd.f32 %v1816, %v1817
        %v1819 = vsel %vm1056, %v1780, 0.0
        %v1820 = vadd.f32 %v1818, %v1819
        %v1821 = vsel %vm1056, %v1781, 0.0
        %v1822 = vadd.f32 %v1820, %v1821
        %v1823 = vsel %vm1056, %v1782, 0.0
        %v1824 = vadd.f32 %v1822, %v1823
        %v1825 = vsel %vm1056, %v1783, 0.0
        %v1826 = vadd.f32 %v1824, %v1825
        %v1827 = vsel %vm1056, %v1784, 0.0
        %v1828 = vadd.f32 %v1826, %v1827
        %v1829 = vsel %vm1056, %v1785, 0.0
        %v1830 = vadd.f32 %v1828, %v1829
        %v1831 = vsel %vm1056, %v1786, 0.0
        %v1832 = vadd.f32 %v1830, %v1831
        %v1833 = vsel %vm1056, %v1787, 0.0
        %v1834 = vadd.f32 %v1832, %v1833
        %v1835 = vsel %vm1056, %v1788, 0.0
        %v1836 = vadd.f32 %v1834, %v1835
        %v1837 = vrot.slane %v1836, 4
        %v1838 = vadd.f32 %v1836, %v1837
        %v1839 = vrot.slane %v1838, 2
        %v1840 = vadd.f32 %v1838, %v1839
        %v1841 = vrot.slane %v1840, 1
        %v1842 = vadd.f32 %v1840, %v1841
        %v1843 = vadd.f32 %v1110, %v1842
        %v1844 = vmul.f32 %v1843, 0.00390625
        %v1845 = vld [vmem:[%s3] sm:$0xff]
        %v1846 = vld [vmem:[%s3 + $0x8] sm:$0xff]
        %v1847 = vld [vmem:[%s3 + $0x10] sm:$0xff]
        %v1848 = vld [vmem:[%s3 + $0x18] sm:$0xff]
        %v1849 = vld [vmem:[%s3 + $0x20] sm:$0xff]
        %v1850 = vld [vmem:[%s3 + $0x28] sm:$0xff]
        %v1851 = vld [vmem:[%s3 + $0x30] sm:$0xff]
        %v1852 = vld [vmem:[%s3 + $0x38] sm:$0xff]
        %v1853 = vld [vmem:[%s4] sm:$0x1]
        %v1855 = vsel %vm1056, %v1844, 0
        %1857 = vmatprep.subr.mxu0 0.0
        %1858 = vmatpush1.msra.mxu0 %v1845
        %1859 = vmatprep.subr.mxu0 0.0
        %1860 = vmatpush1.msra.mxu0 %v1846
        %1861 = vmatprep.subr.mxu0 0.0
        %1862 = vmatpush1.msra.mxu0 %v1847
        %1863 = vmatprep.subr.mxu0 0.0
        %1864 = vmatpush1.msra.mxu0 %v1848
        %1865 = vmatprep.subr.mxu0 0.0
        %1866 = vmatpush1.msra.mxu0 %v1849
        %1867 = vmatprep.subr.mxu0 0.0
        %1868 = vmatpush1.msra.mxu0 %v1850
        %1869 = vmatprep.subr.mxu0 0.0
        %1870 = vmatpush1.msra.mxu0 %v1851
        %1871 = vmatprep.subr.mxu0 0.0
        %1872 = vmatpush1.msra.mxu0 %v1852
        %1873 = vmatprep.subr.mxu0 0.0
        %1874 = vmatpush1.msra.mxu0 0.0
        %1875 = vmatprep.subr.mxu0 0.0
        %1876 = vmatpush1.msra.mxu0 0.0
        %1877 = vmatprep.subr.mxu0 0.0
        %1878 = vmatpush1.msra.mxu0 0.0
        %1879 = vmatprep.subr.mxu0 0.0
        %1880 = vmatpush1.msra.mxu0 0.0
        %1881 = vmatprep.subr.mxu0 0.0
        %1882 = vmatpush1.msra.mxu0 0.0
        %1883 = vmatprep.subr.mxu0 0.0
        %1884 = vmatpush1.msra.mxu0 0.0
        %1885 = vmatprep.subr.mxu0 0.0
        %1886 = vmatpush1.msra.mxu0 0.0
        %1887 = vmatprep.subr.mxu0 0.0
        %1888 = vmatpush1.msra.mxu0 0.0
        %1889 = vmatprep.subr.mxu0 0.0
        %1890 = vmatpush1.msra.mxu0 0.0
        %1891 = vmatprep.subr.mxu0 0.0
        %1892 = vmatpush1.msra.mxu0 0.0
        %1893 = vmatprep.subr.mxu0 0.0
        %1894 = vmatpush1.msra.mxu0 0.0
        %1895 = vmatprep.subr.mxu0 0.0
        %1896 = vmatpush1.msra.mxu0 0.0
        %1897 = vmatprep.subr.mxu0 0.0
        %1898 = vmatpush1.msra.mxu0 0.0
        %1899 = vmatprep.subr.mxu0 0.0
        %1900 = vmatpush1.msra.mxu0 0.0
        %1901 = vmatprep.subr.mxu0 0.0
        %1902 = vmatpush1.msra.mxu0 0.0
        %1903 = vmatprep.subr.mxu0 0.0
        %1904 = vmatpush1.msra.mxu0 0.0
        %1905 = vmatprep.subr.mxu0 0.0
        %1906 = vmatpush1.msra.mxu0 0.0
        %1907 = vmatprep.subr.mxu0 0.0
        %1908 = vmatpush1.msra.mxu0 0.0
        %1909 = vmatprep.subr.mxu0 0.0
        %1910 = vmatpush1.msra.mxu0 0.0
        %1911 = vmatprep.subr.mxu0 0.0
        %1912 = vmatpush1.msra.mxu0 0.0
        %1913 = vmatprep.subr.mxu0 0.0
        %1914 = vmatpush1.msra.mxu0 0.0
        %1915 = vmatprep.subr.mxu0 0.0
        %1916 = vmatpush1.msra.mxu0 0.0
        %1917 = vmatprep.subr.mxu0 0.0
        %1918 = vmatpush1.msra.mxu0 0.0
        %1919 = vmatprep.subr.mxu0 0.0
        %1920 = vmatpush1.msra.mxu0 0.0
        %1921 = vmatprep.mubr.f32.mxu0 0.0
        %1922 = vmatmul.mubr.f32.gmra.mrb[0].mxu0 %v1855
        %v1923 = vpop.f32.mrb[0].mxu0
        %v1924 = vadd.f32 %v1853, %v1923
        %v1925 = vpop.f32.mrb[0].mxu0
        %1926 = vdwg.mxu0
        %v1927 = vmax.f32 %v1924, 0.0
        %v1928 = vld [vmem:[%s5] sm:$0xff]
        %v1929 = vld [vmem:[%s5 + $0x8] sm:$0xff]
        %v1930 = vld [vmem:[%s5 + $0x10] sm:$0xff]
        %v1931 = vld [vmem:[%s5 + $0x18] sm:$0xff]
        %v1932 = vld [vmem:[%s6] sm:$0x1]
        %vm1933 = vcmask 261120
        %v1935 = vsel %vm1933, %v1927, 0
        %1937 = vmatprep.subr.mxu0 0.0
        %1938 = vmatpush1.msra.mxu0 %v1928
        %1939 = vmatprep.subr.mxu0 0.0
        %1940 = vmatpush1.msra.mxu0 %v1929
        %1941 = vmatprep.subr.mxu0 0.0
        %1942 = vmatpush1.msra.mxu0 %v1930
        %1943 = vmatprep.subr.mxu0 0.0
        %1944 = vmatpush1.msra.mxu0 %v1931
        %1945 = vmatprep.subr.mxu0 0.0
        %1946 = vmatpush1.msra.mxu0 0.0
        %1947 = vmatprep.subr.mxu0 0.0
        %1948 = vmatpush1.msra.mxu0 0.0
        %1949 = vmatprep.subr.mxu0 0.0
        %1950 = vmatpush1.msra.mxu0 0.0
        %1951 = vmatprep.subr.mxu0 0.0
        %1952 = vmatpush1.msra.mxu0 0.0
        %1953 = vmatprep.subr.mxu0 0.0
        %1954 = vmatpush1.msra.mxu0 0.0
        %1955 = vmatprep.subr.mxu0 0.0
        %1956 = vmatpush1.msra.mxu0 0.0
        %1957 = vmatprep.subr.mxu0 0.0
        %1958 = vmatpush1.msra.mxu0 0.0
        %1959 = vmatprep.subr.mxu0 0.0
        %1960 = vmatpush1.msra.mxu0 0.0
        %1961 = vmatprep.subr.mxu0 0.0
        %1962 = vmatpush1.msra.mxu0 0.0
        %1963 = vmatprep.subr.mxu0 0.0
        %1964 = vmatpush1.msra.mxu0 0.0
        %1965 = vmatprep.subr.mxu0 0.0
        %1966 = vmatpush1.msra.mxu0 0.0
        %1967 = vmatprep.subr.mxu0 0.0
        %1968 = vmatpush1.msra.mxu0 0.0
        %1969 = vmatprep.subr.mxu0 0.0
        %1970 = vmatpush1.msra.mxu0 0.0
        %1971 = vmatprep.subr.mxu0 0.0
        %1972 = vmatpush1.msra.mxu0 0.0
        %1973 = vmatprep.subr.mxu0 0.0
        %1974 = vmatpush1.msra.mxu0 0.0
        %1975 = vmatprep.subr.mxu0 0.0
        %1976 = vmatpush1.msra.mxu0 0.0
        %1977 = vmatprep.subr.mxu0 0.0
        %1978 = vmatpush1.msra.mxu0 0.0
        %1979 = vmatprep.subr.mxu0 0.0
        %1980 = vmatpush1.msra.mxu0 0.0
        %1981 = vmatprep.subr.mxu0 0.0
        %1982 = vmatpush1.msra.mxu0 0.0
        %1983 = vmatprep.subr.mxu0 0.0
        %1984 = vmatpush1.msra.mxu0 0.0
        %1985 = vmatprep.subr.mxu0 0.0
        %1986 = vmatpush1.msra.mxu0 0.0
        %1987 = vmatprep.subr.mxu0 0.0
        %1988 = vmatpush1.msra.mxu0 0.0
        %1989 = vmatprep.subr.mxu0 0.0
        %1990 = vmatpush1.msra.mxu0 0.0
        %1991 = vmatprep.subr.mxu0 0.0
        %1992 = vmatpush1.msra.mxu0 0.0
        %1993 = vmatprep.subr.mxu0 0.0
        %1994 = vmatpush1.msra.mxu0 0.0
        %1995 = vmatprep.subr.mxu0 0.0
        %1996 = vmatpush1.msra.mxu0 0.0
        %1997 = vmatprep.subr.mxu0 0.0
        %1998 = vmatpush1.msra.mxu0 0.0
        %1999 = vmatprep.subr.mxu0 0.0
        %2000 = vmatpush1.msra.mxu0 0.0
        %2001 = vmatprep.mubr.f32.mxu0 0.0
        %2002 = vmatmul.mubr.f32.gmra.mrb[0].mxu0 %v1935
        %v2003 = vpop.f32.mrb[0].mxu0
        %v2004 = vadd.f32 %v1932, %v2003
        %v2005 = vpop.f32.mrb[0].mxu0
        %2006 = vdwg.mxu0
        %v2007 = vxor.u32 %v2004, 2147483648
        %v2008 = vmul.f32 %v2007, 1.442695
        %v2009 = vpow.pop %v2008
        %v2010 = vadd.f32 %v2009, 1.0
        %v2011 = vrcp.pop %v2010
        %v2012 = vmul.f32 1.0, %v2011
        %v2013 = vlaneseq
        %v2014 = vshrl.u32 %v2013, 7
        %v2015 = vsub.s32 0, %v2014
        %v2016 = vrot.slane %v2012, %v2015
        %v2017 = vld [vmem:[%s7] sm:$0x1]
        %v2019 = vlaneseq
        %v2020 = vshrl.u32 %v2019, 7
        %v2021 = vsub.s32 0, %v2020
        %v2022 = vrot.slane %v2017, %v2021
        %v2024 = vld [vmem:[#allocation3] sm:$0x1]
        %v2026 = vlaneseq
        %v2027 = vshrl.u32 %v2026, 7
        %v2028 = vsub.s32 0, %v2027
        %v2029 = vrot.slane %v2024, %v2028
        %v2031 = vld [vmem:[#allocation2] sm:$0xff]
        %v2032 = vld [vmem:[#allocation2 + $0x8] sm:$0xff]
        %v2033 = vld [vmem:[#allocation2 + $0x10] sm:$0xff]
        %v2034 = vld [vmem:[#allocation2 + $0x18] sm:$0xff]
        %v2035 = vld [vmem:[#allocation2 + $0x20] sm:$0xff]
        %v2036 = vld [vmem:[#allocation2 + $0x28] sm:$0xff]
        %v2037 = vld [vmem:[#allocation2 + $0x30] sm:$0xff]
        %v2038 = vld [vmem:[#allocation2 + $0x38] sm:$0xff]
        %v2039 = vld [vmem:[#allocation2 + $0x40] sm:$0xff]
        %v2040 = vld [vmem:[#allocation2 + $0x48] sm:$0xff]
        %v2041 = vld [vmem:[#allocation2 + $0x50] sm:$0xff]
        %v2042 = vld [vmem:[#allocation2 + $0x58] sm:$0xff]
        %v2043 = vld [vmem:[#allocation2 + $0x60] sm:$0xff]
        %v2044 = vld [vmem:[#allocation2 + $0x68] sm:$0xff]
        %v2045 = vld [vmem:[#allocation2 + $0x70] sm:$0xff]
        %v2046 = vld [vmem:[#allocation2 + $0x78] sm:$0xff]
        %v2047 = vmul.f32 %v2031, %v2022
        %v2048 = vmul.f32 %v2032, %v2022
        %v2049 = vmul.f32 %v2033, %v2022
        %v2050 = vmul.f32 %v2034, %v2022
        %v2051 = vmul.f32 %v2035, %v2022
        %v2052 = vmul.f32 %v2036, %v2022
        %v2053 = vmul.f32 %v2037, %v2022
        %v2054 = vmul.f32 %v2038, %v2022
        %v2055 = vmul.f32 %v2039, %v2022
        %v2056 = vmul.f32 %v2040, %v2022
        %v2057 = vmul.f32 %v2041, %v2022
        %v2058 = vmul.f32 %v2042, %v2022
        %v2059 = vmul.f32 %v2043, %v2022
        %v2060 = vmul.f32 %v2044, %v2022
        %v2061 = vmul.f32 %v2045, %v2022
        %v2062 = vmul.f32 %v2046, %v2022
        %v2063 = vsel %vm1056, %v2047, 0.0
        %2064 = vadd.xlane.f32.xlu0 %v2063
        %v2065 = vpop.xlane.xlu0 %2064
        %v2066 = vsel %vm1056, %v2048, 0.0
        %2067 = vadd.xlane.f32.xlu0 %v2066
        %v2068 = vpop.xlane.xlu0 %2067
        %v2069 = vsel %vm1056, %v2049, 0.0
        %2070 = vadd.xlane.f32.xlu0 %v2069
        %v2071 = vpop.xlane.xlu0 %2070
        %v2072 = vsel %vm1056, %v2050, 0.0
        %2073 = vadd.xlane.f32.xlu0 %v2072
        %v2074 = vpop.xlane.xlu0 %2073
        %v2075 = vsel %vm1056, %v2051, 0.0
        %2076 = vadd.xlane.f32.xlu0 %v2075
        %v2077 = vpop.xlane.xlu0 %2076
        %v2078 = vsel %vm1056, %v2052, 0.0
        %2079 = vadd.xlane.f32.xlu0 %v2078
        %v2080 = vpop.xlane.xlu0 %2079
        %v2081 = vsel %vm1056, %v2053, 0.0
        %2082 = vadd.xlane.f32.xlu0 %v2081
        %v2083 = vpop.xlane.xlu0 %2082
        %v2084 = vsel %vm1056, %v2054, 0.0
        %2085 = vadd.xlane.f32.xlu0 %v2084
        %v2086 = vpop.xlane.xlu0 %2085
        %v2087 = vsel %vm1056, %v2055, 0.0
        %2088 = vadd.xlane.f32.xlu0 %v2087
        %v2089 = vpop.xlane.xlu0 %2088
        %v2090 = vsel %vm1056, %v2056, 0.0
        %2091 = vadd.xlane.f32.xlu0 %v2090
        %v2092 = vpop.xlane.xlu0 %2091
        %v2093 = vsel %vm1056, %v2057, 0.0
        %2094 = vadd.xlane.f32.xlu0 %v2093
        %v2095 = vpop.xlane.xlu0 %2094
        %v2096 = vsel %vm1056, %v2058, 0.0
        %2097 = vadd.xlane.f32.xlu0 %v2096
        %v2098 = vpop.xlane.xlu0 %2097
        %v2099 = vsel %vm1056, %v2059, 0.0
        %2100 = vadd.xlane.f32.xlu0 %v2099
        %v2101 = vpop.xlane.xlu0 %2100
        %v2102 = vsel %vm1056, %v2060, 0.0
        %2103 = vadd.xlane.f32.xlu0 %v2102
        %v2104 = vpop.xlane.xlu0 %2103
        %v2105 = vsel %vm1056, %v2061, 0.0
        %2106 = vadd.xlane.f32.xlu0 %v2105
        %v2107 = vpop.xlane.xlu0 %2106
        %v2108 = vsel %vm1056, %v2062, 0.0
        %2109 = vadd.xlane.f32.xlu0 %v2108
        %v2110 = vpop.xlane.xlu0 %2109
        %v2111 = vadd.f32 %v2065, %v2029
        %v2112 = vadd.f32 %v2068, %v2029
        %v2113 = vadd.f32 %v2071, %v2029
        %v2114 = vadd.f32 %v2074, %v2029
        %v2115 = vadd.f32 %v2077, %v2029
        %v2116 = vadd.f32 %v2080, %v2029
        %v2117 = vadd.f32 %v2083, %v2029
        %v2118 = vadd.f32 %v2086, %v2029
        %v2119 = vadd.f32 %v2089, %v2029
        %v2120 = vadd.f32 %v2092, %v2029
        %v2121 = vadd.f32 %v2095, %v2029
        %v2122 = vadd.f32 %v2098, %v2029
        %v2123 = vadd.f32 %v2101, %v2029
        %v2124 = vadd.f32 %v2104, %v2029
        %v2125 = vadd.f32 %v2107, %v2029
        %v2126 = vadd.f32 %v2110, %v2029
        %v2127 = vmul.f32 %v2031, %v2016
        %v2128 = vmul.f32 %v2032, %v2016
        %v2129 = vmul.f32 %v2033, %v2016
        %v2130 = vmul.f32 %v2034, %v2016
        %v2131 = vmul.f32 %v2035, %v2016
        %v2132 = vmul.f32 %v2036, %v2016
        %v2133 = vmul.f32 %v2037, %v2016
        %v2134 = vmul.f32 %v2038, %v2016
        %v2135 = vmul.f32 %v2039, %v2016
        %v2136 = vmul.f32 %v2040, %v2016
        %v2137 = vmul.f32 %v2041, %v2016
        %v2138 = vmul.f32 %v2042, %v2016
        %v2139 = vmul.f32 %v2043, %v2016
        %v2140 = vmul.f32 %v2044, %v2016
        %v2141 = vmul.f32 %v2045, %v2016
        %v2142 = vmul.f32 %v2046, %v2016
        %v2143 = vxor.u32 %v2111, 2147483648
        %v2144 = vxor.u32 %v2112, 2147483648
        %v2145 = vxor.u32 %v2113, 2147483648
        %v2146 = vxor.u32 %v2114, 2147483648
        %v2147 = vxor.u32 %v2115, 2147483648
        %v2148 = vxor.u32 %v2116, 2147483648
        %v2149 = vxor.u32 %v2117, 2147483648
        %v2150 = vxor.u32 %v2118, 2147483648
        %v2151 = vxor.u32 %v2119, 2147483648
        %v2152 = vxor.u32 %v2120, 2147483648
        %v2153 = vxor.u32 %v2121, 2147483648
        %v2154 = vxor.u32 %v2122, 2147483648
        %v2155 = vxor.u32 %v2123, 2147483648
        %v2156 = vxor.u32 %v2124, 2147483648
        %v2157 = vxor.u32 %v2125, 2147483648
        %v2158 = vxor.u32 %v2126, 2147483648
        %v2159 = vmul.f32 %v2143, 1.442695
        %v2160 = vpow.pop %v2159
        %v2161 = vmul.f32 %v2144, 1.442695
        %v2162 = vpow.pop %v2161
        %v2163 = vmul.f32 %v2145, 1.442695
        %v2164 = vpow.pop %v2163
        %v2165 = vmul.f32 %v2146, 1.442695
        %v2166 = vpow.pop %v2165
        %v2167 = vmul.f32 %v2147, 1.442695
        %v2168 = vpow.pop %v2167
        %v2169 = vmul.f32 %v2148, 1.442695
        %v2170 = vpow.pop %v2169
        %v2171 = vmul.f32 %v2149, 1.442695
        %v2172 = vpow.pop %v2171
        %v2173 = vmul.f32 %v2150, 1.442695
        %v2174 = vpow.pop %v2173
        %v2175 = vmul.f32 %v2151, 1.442695
        %v2176 = vpow.pop %v2175
        %v2177 = vmul.f32 %v2152, 1.442695
        %v2178 = vpow.pop %v2177
        %v2179 = vmul.f32 %v2153, 1.442695
        %v2180 = vpow.pop %v2179
        %v2181 = vmul.f32 %v2154, 1.442695
        %v2182 = vpow.pop %v2181
        %v2183 = vmul.f32 %v2155, 1.442695
        %v2184 = vpow.pop %v2183
        %v2185 = vmul.f32 %v2156, 1.442695
        %v2186 = vpow.pop %v2185
        %v2187 = vmul.f32 %v2157, 1.442695
        %v2188 = vpow.pop %v2187
        %v2189 = vmul.f32 %v2158, 1.442695
        %v2190 = vpow.pop %v2189
        %v2191 = vadd.f32 %v2160, 1.0
        %v2192 = vadd.f32 %v2162, 1.0
        %v2193 = vadd.f32 %v2164, 1.0
        %v2194 = vadd.f32 %v2166, 1.0
        %v2195 = vadd.f32 %v2168, 1.0
        %v2196 = vadd.f32 %v2170, 1.0
        %v2197 = vadd.f32 %v2172, 1.0
        %v2198 = vadd.f32 %v2174, 1.0
        %v2199 = vadd.f32 %v2176, 1.0
        %v2200 = vadd.f32 %v2178, 1.0
        %v2201 = vadd.f32 %v2180, 1.0
        %v2202 = vadd.f32 %v2182, 1.0
        %v2203 = vadd.f32 %v2184, 1.0
        %v2204 = vadd.f32 %v2186, 1.0
        %v2205 = vadd.f32 %v2188, 1.0
        %v2206 = vadd.f32 %v2190, 1.0
        %v2207 = vrcp.pop %v2191
        %v2208 = vmul.f32 1.0, %v2207
        %v2209 = vrcp.pop %v2192
        %v2210 = vmul.f32 1.0, %v2209
        %v2211 = vrcp.pop %v2193
        %v2212 = vmul.f32 1.0, %v2211
        %v2213 = vrcp.pop %v2194
        %v2214 = vmul.f32 1.0, %v2213
        %v2215 = vrcp.pop %v2195
        %v2216 = vmul.f32 1.0, %v2215
        %v2217 = vrcp.pop %v2196
        %v2218 = vmul.f32 1.0, %v2217
        %v2219 = vrcp.pop %v2197
        %v2220 = vmul.f32 1.0, %v2219
        %v2221 = vrcp.pop %v2198
        %v2222 = vmul.f32 1.0, %v2221
        %v2223 = vrcp.pop %v2199
        %v2224 = vmul.f32 1.0, %v2223
        %v2225 = vrcp.pop %v2200
        %v2226 = vmul.f32 1.0, %v2225
        %v2227 = vrcp.pop %v2201
        %v2228 = vmul.f32 1.0, %v2227
        %v2229 = vrcp.pop %v2202
        %v2230 = vmul.f32 1.0, %v2229
        %v2231 = vrcp.pop %v2203
        %v2232 = vmul.f32 1.0, %v2231
        %v2233 = vrcp.pop %v2204
        %v2234 = vmul.f32 1.0, %v2233
        %v2235 = vrcp.pop %v2205
        %v2236 = vmul.f32 1.0, %v2235
        %v2237 = vrcp.pop %v2206
        %v2238 = vmul.f32 1.0, %v2237
        %2240 = vset.pattern.permute.xlu0 0
        %2241 = vperm.xlu0 %2240, %v2208
        %v2242 = vpop.permute.xlu0 %2241
        %2245 = vset.pattern.permute.xlu0 0
        %2246 = vperm.xlu0 %2245, %v2210
        %v2247 = vpop.permute.xlu0 %2246
        %2250 = vset.pattern.permute.xlu0 0
        %2251 = vperm.xlu0 %2250, %v2212
        %v2252 = vpop.permute.xlu0 %2251
        %2255 = vset.pattern.permute.xlu0 0
        %2256 = vperm.xlu0 %2255, %v2214
        %v2257 = vpop.permute.xlu0 %2256
        %2260 = vset.pattern.permute.xlu0 0
        %2261 = vperm.xlu0 %2260, %v2216
        %v2262 = vpop.permute.xlu0 %2261
        %2265 = vset.pattern.permute.xlu0 0
        %2266 = vperm.xlu0 %2265, %v2218
        %v2267 = vpop.permute.xlu0 %2266
        %2270 = vset.pattern.permute.xlu0 0
        %2271 = vperm.xlu0 %2270, %v2220
        %v2272 = vpop.permute.xlu0 %2271
        %2275 = vset.pattern.permute.xlu0 0
        %2276 = vperm.xlu0 %2275, %v2222
        %v2277 = vpop.permute.xlu0 %2276
        %2280 = vset.pattern.permute.xlu0 0
        %2281 = vperm.xlu0 %2280, %v2224
        %v2282 = vpop.permute.xlu0 %2281
        %2285 = vset.pattern.permute.xlu0 0
        %2286 = vperm.xlu0 %2285, %v2226
        %v2287 = vpop.permute.xlu0 %2286
        %2290 = vset.pattern.permute.xlu0 0
        %2291 = vperm.xlu0 %2290, %v2228
        %v2292 = vpop.permute.xlu0 %2291
        %2295 = vset.pattern.permute.xlu0 0
        %2296 = vperm.xlu0 %2295, %v2230
        %v2297 = vpop.permute.xlu0 %2296
        %2300 = vset.pattern.permute.xlu0 0
        %2301 = vperm.xlu0 %2300, %v2232
        %v2302 = vpop.permute.xlu0 %2301
        %2305 = vset.pattern.permute.xlu0 0
        %2306 = vperm.xlu0 %2305, %v2234
        %v2307 = vpop.permute.xlu0 %2306
        %2310 = vset.pattern.permute.xlu0 0
        %2311 = vperm.xlu0 %2310, %v2236
        %v2312 = vpop.permute.xlu0 %2311
        %2315 = vset.pattern.permute.xlu0 0
        %2316 = vperm.xlu0 %2315, %v2238
        %v2317 = vpop.permute.xlu0 %2316
        %v2319 = vmul.f32 %v2031, %v2242
        %v2320 = vmul.f32 %v2032, %v2247
        %v2321 = vmul.f32 %v2033, %v2252
        %v2322 = vmul.f32 %v2034, %v2257
        %v2323 = vmul.f32 %v2035, %v2262
        %v2324 = vmul.f32 %v2036, %v2267
        %v2325 = vmul.f32 %v2037, %v2272
        %v2326 = vmul.f32 %v2038, %v2277
        %v2327 = vmul.f32 %v2039, %v2282
        %v2328 = vmul.f32 %v2040, %v2287
        %v2329 = vmul.f32 %v2041, %v2292
        %v2330 = vmul.f32 %v2042, %v2297
        %v2331 = vmul.f32 %v2043, %v2302
        %v2332 = vmul.f32 %v2044, %v2307
        %v2333 = vmul.f32 %v2045, %v2312
        %v2334 = vmul.f32 %v2046, %v2317
        %v2335 = vmax.f32 %v2127, %v2319
        %v2336 = vmax.f32 %v2128, %v2320
        %v2337 = vmax.f32 %v2129, %v2321
        %v2338 = vmax.f32 %v2130, %v2322
        %v2339 = vmax.f32 %v2131, %v2323
        %v2340 = vmax.f32 %v2132, %v2324
        %v2341 = vmax.f32 %v2133, %v2325
        %v2342 = vmax.f32 %v2134, %v2326
        %v2343 = vmax.f32 %v2135, %v2327
        %v2344 = vmax.f32 %v2136, %v2328
        %v2345 = vmax.f32 %v2137, %v2329
        %v2346 = vmax.f32 %v2138, %v2330
        %v2347 = vmax.f32 %v2139, %v2331
        %v2348 = vmax.f32 %v2140, %v2332
        %v2349 = vmax.f32 %v2141, %v2333
        %v2350 = vmax.f32 %v2142, %v2334
        %s2351 = smul.u32 0, 16
        %s2352 = scalar_lea.vmem %s327, %s2351 [#allocation4]
        %2353 = vst.msk [vmem:[%s2352] sm:$0xff] %vm1056, %v2335
        %2354 = vst.msk [vmem:[%s2352 + $0x8] sm:$0xff] %vm1056, %v2336
        %2355 = vst.msk [vmem:[%s2352 + $0x10] sm:$0xff] %vm1056, %v2337
        %2356 = vst.msk [vmem:[%s2352 + $0x18] sm:$0xff] %vm1056, %v2338
        %2357 = vst.msk [vmem:[%s2352 + $0x20] sm:$0xff] %vm1056, %v2339
        %2358 = vst.msk [vmem:[%s2352 + $0x28] sm:$0xff] %vm1056, %v2340
        %2359 = vst.msk [vmem:[%s2352 + $0x30] sm:$0xff] %vm1056, %v2341
        %2360 = vst.msk [vmem:[%s2352 + $0x38] sm:$0xff] %vm1056, %v2342
        %2361 = vst.msk [vmem:[%s2352 + $0x40] sm:$0xff] %vm1056, %v2343
        %2362 = vst.msk [vmem:[%s2352 + $0x48] sm:$0xff] %vm1056, %v2344
        %2363 = vst.msk [vmem:[%s2352 + $0x50] sm:$0xff] %vm1056, %v2345
        %2364 = vst.msk [vmem:[%s2352 + $0x58] sm:$0xff] %vm1056, %v2346
        %2365 = vst.msk [vmem:[%s2352 + $0x60] sm:$0xff] %vm1056, %v2347
        %2366 = vst.msk [vmem:[%s2352 + $0x68] sm:$0xff] %vm1056, %v2348
        %2367 = vst.msk [vmem:[%s2352 + $0x70] sm:$0xff] %vm1056, %v2349
        %2368 = vst.msk [vmem:[%s2352 + $0x78] sm:$0xff] %vm1056, %v2350
        %v2369 = vld [vmem:[%s1789] sm:$0xff]
        %v2370 = vld [vmem:[%s1789 + $0x8] sm:$0xff]
        %v2371 = vld [vmem:[%s1789 + $0x10] sm:$0xff]
        %v2372 = vld [vmem:[%s1789 + $0x18] sm:$0xff]
        %v2373 = vld [vmem:[%s1789 + $0x20] sm:$0xff]
        %v2374 = vld [vmem:[%s1789 + $0x28] sm:$0xff]
        %v2375 = vld [vmem:[%s1789 + $0x30] sm:$0xff]
        %v2376 = vld [vmem:[%s1789 + $0x38] sm:$0xff]
        %v2377 = vld [vmem:[%s1789 + $0x40] sm:$0xff]
        %v2378 = vld [vmem:[%s1789 + $0x48] sm:$0xff]
        %v2379 = vld [vmem:[%s1789 + $0x50] sm:$0xff]
        %v2380 = vld [vmem:[%s1789 + $0x58] sm:$0xff]
        %v2381 = vld [vmem:[%s1789 + $0x60] sm:$0xff]
        %v2382 = vld [vmem:[%s1789 + $0x68] sm:$0xff]
        %v2383 = vld [vmem:[%s1789 + $0x70] sm:$0xff]
        %v2384 = vld [vmem:[%s1789 + $0x78] sm:$0xff]
        %v2385 = vmul.f32 %v2369, %v2022
        %v2386 = vmul.f32 %v2370, %v2022
        %v2387 = vmul.f32 %v2371, %v2022
        %v2388 = vmul.f32 %v2372, %v2022
        %v2389 = vmul.f32 %v2373, %v2022
        %v2390 = vmul.f32 %v2374, %v2022
        %v2391 = vmul.f32 %v2375, %v2022
        %v2392 = vmul.f32 %v2376, %v2022
        %v2393 = vmul.f32 %v2377, %v2022
        %v2394 = vmul.f32 %v2378, %v2022
        %v2395 = vmul.f32 %v2379, %v2022
        %v2396 = vmul.f32 %v2380, %v2022
        %v2397 = vmul.f32 %v2381, %v2022
        %v2398 = vmul.f32 %v2382, %v2022
        %v2399 = vmul.f32 %v2383, %v2022
        %v2400 = vmul.f32 %v2384, %v2022
        %v2401 = vsel %vm1056, %v2385, 0.0
        %2402 = vadd.xlane.f32.xlu0 %v2401
        %v2403 = vpop.xlane.xlu0 %2402
        %v2404 = vsel %vm1056, %v2386, 0.0
        %2405 = vadd.xlane.f32.xlu0 %v2404
        %v2406 = vpop.xlane.xlu0 %2405
        %v2407 = vsel %vm1056, %v2387, 0.0
        %2408 = vadd.xlane.f32.xlu0 %v2407
        %v2409 = vpop.xlane.xlu0 %2408
        %v2410 = vsel %vm1056, %v2388, 0.0
        %2411 = vadd.xlane.f32.xlu0 %v2410
        %v2412 = vpop.xlane.xlu0 %2411
        %v2413 = vsel %vm1056, %v2389, 0.0
        %2414 = vadd.xlane.f32.xlu0 %v2413
        %v2415 = vpop.xlane.xlu0 %2414
        %v2416 = vsel %vm1056, %v2390, 0.0
        %2417 = vadd.xlane.f32.xlu0 %v2416
        %v2418 = vpop.xlane.xlu0 %2417
        %v2419 = vsel %vm1056, %v2391, 0.0
        %2420 = vadd.xlane.f32.xlu0 %v2419
        %v2421 = vpop.xlane.xlu0 %2420
        %v2422 = vsel %vm1056, %v2392, 0.0
        %2423 = vadd.xlane.f32.xlu0 %v2422
        %v2424 = vpop.xlane.xlu0 %2423
        %v2425 = vsel %vm1056, %v2393, 0.0
        %2426 = vadd.xlane.f32.xlu0 %v2425
        %v2427 = vpop.xlane.xlu0 %2426
        %v2428 = vsel %vm1056, %v2394, 0.0
        %2429 = vadd.xlane.f32.xlu0 %v2428
        %v2430 = vpop.xlane.xlu0 %2429
        %v2431 = vsel %vm1056, %v2395, 0.0
        %2432 = vadd.xlane.f32.xlu0 %v2431
        %v2433 = vpop.xlane.xlu0 %2432
        %v2434 = vsel %vm1056, %v2396, 0.0
        %2435 = vadd.xlane.f32.xlu0 %v2434
        %v2436 = vpop.xlane.xlu0 %2435
        %v2437 = vsel %vm1056, %v2397, 0.0
        %2438 = vadd.xlane.f32.xlu0 %v2437
        %v2439 = vpop.xlane.xlu0 %2438
        %v2440 = vsel %vm1056, %v2398, 0.0
        %2441 = vadd.xlane.f32.xlu0 %v2440
        %v2442 = vpop.xlane.xlu0 %2441
        %v2443 = vsel %vm1056, %v2399, 0.0
        %2444 = vadd.xlane.f32.xlu0 %v2443
        %v2445 = vpop.xlane.xlu0 %2444
        %v2446 = vsel %vm1056, %v2400, 0.0
        %2447 = vadd.xlane.f32.xlu0 %v2446
        %v2448 = vpop.xlane.xlu0 %2447
        %v2449 = vadd.f32 %v2403, %v2029
        %v2450 = vadd.f32 %v2406, %v2029
        %v2451 = vadd.f32 %v2409, %v2029
        %v2452 = vadd.f32 %v2412, %v2029
        %v2453 = vadd.f32 %v2415, %v2029
        %v2454 = vadd.f32 %v2418, %v2029
        %v2455 = vadd.f32 %v2421, %v2029
        %v2456 = vadd.f32 %v2424, %v2029
        %v2457 = vadd.f32 %v2427, %v2029
        %v2458 = vadd.f32 %v2430, %v2029
        %v2459 = vadd.f32 %v2433, %v2029
        %v2460 = vadd.f32 %v2436, %v2029
        %v2461 = vadd.f32 %v2439, %v2029
        %v2462 = vadd.f32 %v2442, %v2029
        %v2463 = vadd.f32 %v2445, %v2029
        %v2464 = vadd.f32 %v2448, %v2029
        %v2465 = vmul.f32 %v2369, %v2016
        %v2466 = vmul.f32 %v2370, %v2016
        %v2467 = vmul.f32 %v2371, %v2016
        %v2468 = vmul.f32 %v2372, %v2016
        %v2469 = vmul.f32 %v2373, %v2016
        %v2470 = vmul.f32 %v2374, %v2016
        %v2471 = vmul.f32 %v2375, %v2016
        %v2472 = vmul.f32 %v2376, %v2016
        %v2473 = vmul.f32 %v2377, %v2016
        %v2474 = vmul.f32 %v2378, %v2016
        %v2475 = vmul.f32 %v2379, %v2016
        %v2476 = vmul.f32 %v2380, %v2016
        %v2477 = vmul.f32 %v2381, %v2016
        %v2478 = vmul.f32 %v2382, %v2016
        %v2479 = vmul.f32 %v2383, %v2016
        %v2480 = vmul.f32 %v2384, %v2016
        %v2481 = vxor.u32 %v2449, 2147483648
        %v2482 = vxor.u32 %v2450, 2147483648
        %v2483 = vxor.u32 %v2451, 2147483648
        %v2484 = vxor.u32 %v2452, 2147483648
        %v2485 = vxor.u32 %v2453, 2147483648
        %v2486 = vxor.u32 %v2454, 2147483648
        %v2487 = vxor.u32 %v2455, 2147483648
        %v2488 = vxor.u32 %v2456, 2147483648
        %v2489 = vxor.u32 %v2457, 2147483648
        %v2490 = vxor.u32 %v2458, 2147483648
        %v2491 = vxor.u32 %v2459, 2147483648
        %v2492 = vxor.u32 %v2460, 2147483648
        %v2493 = vxor.u32 %v2461, 2147483648
        %v2494 = vxor.u32 %v2462, 2147483648
        %v2495 = vxor.u32 %v2463, 2147483648
        %v2496 = vxor.u32 %v2464, 2147483648
        %v2497 = vmul.f32 %v2481, 1.442695
        %v2498 = vpow.pop %v2497
        %v2499 = vmul.f32 %v2482, 1.442695
        %v2500 = vpow.pop %v2499
        %v2501 = vmul.f32 %v2483, 1.442695
        %v2502 = vpow.pop %v2501
        %v2503 = vmul.f32 %v2484, 1.442695
        %v2504 = vpow.pop %v2503
        %v2505 = vmul.f32 %v2485, 1.442695
        %v2506 = vpow.pop %v2505
        %v2507 = vmul.f32 %v2486, 1.442695
        %v2508 = vpow.pop %v2507
        %v2509 = vmul.f32 %v2487, 1.442695
        %v2510 = vpow.pop %v2509
        %v2511 = vmul.f32 %v2488, 1.442695
        %v2512 = vpow.pop %v2511
        %v2513 = vmul.f32 %v2489, 1.442695
        %v2514 = vpow.pop %v2513
        %v2515 = vmul.f32 %v2490, 1.442695
        %v2516 = vpow.pop %v2515
        %v2517 = vmul.f32 %v2491, 1.442695
        %v2518 = vpow.pop %v2517
        %v2519 = vmul.f32 %v2492, 1.442695
        %v2520 = vpow.pop %v2519
        %v2521 = vmul.f32 %v2493, 1.442695
        %v2522 = vpow.pop %v2521
        %v2523 = vmul.f32 %v2494, 1.442695
        %v2524 = vpow.pop %v2523
        %v2525 = vmul.f32 %v2495, 1.442695
        %v2526 = vpow.pop %v2525
        %v2527 = vmul.f32 %v2496, 1.442695
        %v2528 = vpow.pop %v2527
        %v2529 = vadd.f32 %v2498, 1.0
        %v2530 = vadd.f32 %v2500, 1.0
        %v2531 = vadd.f32 %v2502, 1.0
        %v2532 = vadd.f32 %v2504, 1.0
        %v2533 = vadd.f32 %v2506, 1.0
        %v2534 = vadd.f32 %v2508, 1.0
        %v2535 = vadd.f32 %v2510, 1.0
        %v2536 = vadd.f32 %v2512, 1.0
        %v2537 = vadd.f32 %v2514, 1.0
        %v2538 = vadd.f32 %v2516, 1.0
        %v2539 = vadd.f32 %v2518, 1.0
        %v2540 = vadd.f32 %v2520, 1.0
        %v2541 = vadd.f32 %v2522, 1.0
        %v2542 = vadd.f32 %v2524, 1.0
        %v2543 = vadd.f32 %v2526, 1.0
        %v2544 = vadd.f32 %v2528, 1.0
        %v2545 = vrcp.pop %v2529
        %v2546 = vmul.f32 1.0, %v2545
        %v2547 = vrcp.pop %v2530
        %v2548 = vmul.f32 1.0, %v2547
        %v2549 = vrcp.pop %v2531
        %v2550 = vmul.f32 1.0, %v2549
        %v2551 = vrcp.pop %v2532
        %v2552 = vmul.f32 1.0, %v2551
        %v2553 = vrcp.pop %v2533
        %v2554 = vmul.f32 1.0, %v2553
        %v2555 = vrcp.pop %v2534
        %v2556 = vmul.f32 1.0, %v2555
        %v2557 = vrcp.pop %v2535
        %v2558 = vmul.f32 1.0, %v2557
        %v2559 = vrcp.pop %v2536
        %v2560 = vmul.f32 1.0, %v2559
        %v2561 = vrcp.pop %v2537
        %v2562 = vmul.f32 1.0, %v2561
        %v2563 = vrcp.pop %v2538
        %v2564 = vmul.f32 1.0, %v2563
        %v2565 = vrcp.pop %v2539
        %v2566 = vmul.f32 1.0, %v2565
        %v2567 = vrcp.pop %v2540
        %v2568 = vmul.f32 1.0, %v2567
        %v2569 = vrcp.pop %v2541
        %v2570 = vmul.f32 1.0, %v2569
        %v2571 = vrcp.pop %v2542
        %v2572 = vmul.f32 1.0, %v2571
        %v2573 = vrcp.pop %v2543
        %v2574 = vmul.f32 1.0, %v2573
        %v2575 = vrcp.pop %v2544
        %v2576 = vmul.f32 1.0, %v2575
        %2578 = vset.pattern.permute.xlu0 0
        %2579 = vperm.xlu0 %2578, %v2546
        %v2580 = vpop.permute.xlu0 %2579
        %2583 = vset.pattern.permute.xlu0 0
        %2584 = vperm.xlu0 %2583, %v2548
        %v2585 = vpop.permute.xlu0 %2584
        %2588 = vset.pattern.permute.xlu0 0
        %2589 = vperm.xlu0 %2588, %v2550
        %v2590 = vpop.permute.xlu0 %2589
        %2593 = vset.pattern.permute.xlu0 0
        %2594 = vperm.xlu0 %2593, %v2552
        %v2595 = vpop.permute.xlu0 %2594
        %2598 = vset.pattern.permute.xlu0 0
        %2599 = vperm.xlu0 %2598, %v2554
        %v2600 = vpop.permute.xlu0 %2599
        %2603 = vset.pattern.permute.xlu0 0
        %2604 = vperm.xlu0 %2603, %v2556
        %v2605 = vpop.permute.xlu0 %2604
        %2608 = vset.pattern.permute.xlu0 0
        %2609 = vperm.xlu0 %2608, %v2558
        %v2610 = vpop.permute.xlu0 %2609
        %2613 = vset.pattern.permute.xlu0 0
        %2614 = vperm.xlu0 %2613, %v2560
        %v2615 = vpop.permute.xlu0 %2614
        %2618 = vset.pattern.permute.xlu0 0
        %2619 = vperm.xlu0 %2618, %v2562
        %v2620 = vpop.permute.xlu0 %2619
        %2623 = vset.pattern.permute.xlu0 0
        %2624 = vperm.xlu0 %2623, %v2564
        %v2625 = vpop.permute.xlu0 %2624
        %2628 = vset.pattern.permute.xlu0 0
        %2629 = vperm.xlu0 %2628, %v2566
        %v2630 = vpop.permute.xlu0 %2629
        %2633 = vset.pattern.permute.xlu0 0
        %2634 = vperm.xlu0 %2633, %v2568
        %v2635 = vpop.permute.xlu0 %2634
        %2638 = vset.pattern.permute.xlu0 0
        %2639 = vperm.xlu0 %2638, %v2570
        %v2640 = vpop.permute.xlu0 %2639
        %2643 = vset.pattern.permute.xlu0 0
        %2644 = vperm.xlu0 %2643, %v2572
        %v2645 = vpop.permute.xlu0 %2644
        %2648 = vset.pattern.permute.xlu0 0
        %2649 = vperm.xlu0 %2648, %v2574
        %v2650 = vpop.permute.xlu0 %2649
        %2653 = vset.pattern.permute.xlu0 0
        %2654 = vperm.xlu0 %2653, %v2576
        %v2655 = vpop.permute.xlu0 %2654
        %v2657 = vmul.f32 %v2369, %v2580
        %v2658 = vmul.f32 %v2370, %v2585
        %v2659 = vmul.f32 %v2371, %v2590
        %v2660 = vmul.f32 %v2372, %v2595
        %v2661 = vmul.f32 %v2373, %v2600
        %v2662 = vmul.f32 %v2374, %v2605
        %v2663 = vmul.f32 %v2375, %v2610
        %v2664 = vmul.f32 %v2376, %v2615
        %v2665 = vmul.f32 %v2377, %v2620
        %v2666 = vmul.f32 %v2378, %v2625
        %v2667 = vmul.f32 %v2379, %v2630
        %v2668 = vmul.f32 %v2380, %v2635
        %v2669 = vmul.f32 %v2381, %v2640
        %v2670 = vmul.f32 %v2382, %v2645
        %v2671 = vmul.f32 %v2383, %v2650
        %v2672 = vmul.f32 %v2384, %v2655
        %v2673 = vmax.f32 %v2465, %v2657
        %v2674 = vmax.f32 %v2466, %v2658
        %v2675 = vmax.f32 %v2467, %v2659
        %v2676 = vmax.f32 %v2468, %v2660
        %v2677 = vmax.f32 %v2469, %v2661
        %v2678 = vmax.f32 %v2470, %v2662
        %v2679 = vmax.f32 %v2471, %v2663
        %v2680 = vmax.f32 %v2472, %v2664
        %v2681 = vmax.f32 %v2473, %v2665
        %v2682 = vmax.f32 %v2474, %v2666
        %v2683 = vmax.f32 %v2475, %v2667
        %v2684 = vmax.f32 %v2476, %v2668
        %v2685 = vmax.f32 %v2477, %v2669
        %v2686 = vmax.f32 %v2478, %v2670
        %v2687 = vmax.f32 %v2479, %v2671
        %v2688 = vmax.f32 %v2480, %v2672
        %s2689 = smul.u32 8, 16
        %s2690 = scalar_lea.vmem %s327, %s2689 [#allocation4]
        %2691 = vst.msk [vmem:[%s2690] sm:$0xff] %vm1056, %v2673
        %2692 = vst.msk [vmem:[%s2690 + $0x8] sm:$0xff] %vm1056, %v2674
        %2693 = vst.msk [vmem:[%s2690 + $0x10] sm:$0xff] %vm1056, %v2675
        %2694 = vst.msk [vmem:[%s2690 + $0x18] sm:$0xff] %vm1056, %v2676
        %2695 = vst.msk [vmem:[%s2690 + $0x20] sm:$0xff] %vm1056, %v2677
        %2696 = vst.msk [vmem:[%s2690 + $0x28] sm:$0xff] %vm1056, %v2678
        %2697 = vst.msk [vmem:[%s2690 + $0x30] sm:$0xff] %vm1056, %v2679
        %2698 = vst.msk [vmem:[%s2690 + $0x38] sm:$0xff] %vm1056, %v2680
        %2699 = vst.msk [vmem:[%s2690 + $0x40] sm:$0xff] %vm1056, %v2681
        %2700 = vst.msk [vmem:[%s2690 + $0x48] sm:$0xff] %vm1056, %v2682
        %2701 = vst.msk [vmem:[%s2690 + $0x50] sm:$0xff] %vm1056, %v2683
        %2702 = vst.msk [vmem:[%s2690 + $0x58] sm:$0xff] %vm1056, %v2684
        %2703 = vst.msk [vmem:[%s2690 + $0x60] sm:$0xff] %vm1056, %v2685
        %2704 = vst.msk [vmem:[%s2690 + $0x68] sm:$0xff] %vm1056, %v2686
        %2705 = vst.msk [vmem:[%s2690 + $0x70] sm:$0xff] %vm1056, %v2687
        %2706 = vst.msk [vmem:[%s2690 + $0x78] sm:$0xff] %vm1056, %v2688
        %s2707 = sand.u32 %s227, 1
        %s2708 = scalar_lea.sflag [#allocation5], %s2707
        %s2709 = sand.u32 %s227, 1
        %s2710 = smul.addr %s2709, 256
        %s2711 = scalar_lea.vmem [#allocation4], %s2710
        // Predicated region
        $region57: #{attention_block_forward.1} parent=55 // pred_check
          %p2712 = pneg %p237
        $region58: #{attention_block_forward.1} parent=55 // pred_check_branch
          %2714 = sbr.rel (%p2712) target = $region60
        $region59: #{attention_block_forward.1} parent=55 // pred_region
          %s2716 = ssub.s32 4096, 4096
          %2717 = vsyncadd %s2708, %s2716
          %s2718 = smul.addr %s25, 32
          %s2719 = smul.addr %s2718, 128
          %s2720 = scalar_lea.hbm %s9, %s2719
          %s2721 = sshll.u32 %s2711, 4
          %s2722 = int_to_ptr.vmem [resolvable:$true] %s2721
          %2727 = dma.vmem_to_hbm [thread:$0]  %s2722, 4096, %s2720, %s2708, 128, 128, 8
        $region60: #{attention_block_forward.1} parent=55 // pred_fallthru
          _
      $region56: #{attention_block_forward.1} parent=5 // pred_fallthru
        _
      %p2728 = scmp.le.s32.totalorder 2, %s20
      // Predicated region
      $region61: #{attention_block_forward.1} parent=5 // pred_check
        %p2729 = pneg %p2728
      $region62: #{attention_block_forward.1} parent=5 // pred_check_branch
        %2731 = sbr.rel (%p2729) target = $region64
      $region63: #{attention_block_forward.1} parent=5 // pred_region
        %s2732 = ssub.s32 %s20, 2
        // Predicated region
        $region65: #{attention_block_forward.1} parent=63 // pred_check
          %p2733 = pneg %p243
        $region66: #{attention_block_forward.1} parent=63 // pred_check_branch
          %2735 = sbr.rel (%p2733) target = $region68
        $region67: #{attention_block_forward.1} parent=63 // pred_region
          %s2736 = sand.u32 %s228, 1
          %s2737 = scalar_lea.sflag [#allocation5], %s2736
          %s2738 = sand.u32 %s228, 1
          %s2739 = smul.addr %s2738, 256
          %s2740 = scalar_lea.vmem [#allocation4], %s2739
          %2741 = dma.done %s2737, 4096
        $region68: #{attention_block_forward.1} parent=63 // pred_fallthru
          _
      $region64: #{attention_block_forward.1} parent=5 // pred_fallthru
        _
    $region6: #{attention_block_forward.1} parent=1 // loop_footer
      %s24 = sadd.s32 1, %s20
    $region7: #{attention_block_forward.1} parent=1 // loop_footer_branch
      %19 = sbr.rel target = $region3
    $region8: #{attention_block_forward.1} parent=1 // loop_exit
      _
    %2742 = vsyncpa [#allocation5], 1
    %s2743 = scalar_lea.sflag [#allocation5], 1
    %2744 = vsyncpa %s2743, 1

</llo_original>
